<compile_context>
chip_gen: v5e
topology: v5e:2x2
jax: 0.10.0
libtpu: 0.0.40
codegen_flags: <defaults>
</compile_context>

<pallas_src>
import functools

import jax
import jax.numpy as jnp
from jax.experimental import pallas as pl
from jax.experimental.pallas import tpu as pltpu

_LANE = 128


def _round_up(x, m):
    return ((x + m - 1) // m) * m


def _pad_to(a, shape):
    pads = [(0, t - s) for s, t in zip(a.shape, shape)]
    if all(p == (0, 0) for p in pads):
        return a
    return jnp.pad(a, pads)


def _vmem_cap_bytes():
    """Generation-aware VMEM ceiling, with headroom for compiler-internal scratch."""
    try:
        cap = int(pltpu.get_tpu_info().vmem_capacity_bytes)
    except Exception:
        cap = 64 << 20  # v7x has the smallest VMEM per TensorCore (64 MiB)
    return max(cap - (8 << 20), 32 << 20)


def _mlp_residual_kernel(x_ref, wa_ref, ba_ref, wb_ref, wr_ref, bbr_ref, o_ref,
                         *, compute_dtype):
    # x arrives in its storage dtype; cast in-kernel (cheap VPU op, avoids an
    # extra wrapper-side HBM pass over x).
    x = x_ref[...].astype(compute_dtype)                                    # (bt, Din)
    # hidden = relu(x @ Wa^T + ba): f32 MXU accumulation, f32 bias add.
    h = jnp.dot(x, wa_ref[...], preferred_element_type=jnp.float32) + ba_ref[...]
    h = jnp.maximum(h, 0.0).astype(compute_dtype)                           # (bt, Hp)
    # out = h @ Wb^T + x @ Wr^T + (bb + br): two accumulating MXU dots, no scratch.
    out = jnp.dot(h, wb_ref[...], preferred_element_type=jnp.float32)
    out = out + jnp.dot(x, wr_ref[...], preferred_element_type=jnp.float32)
    out = out + bbr_ref[...]
    o_ref[...] = out.astype(o_ref.dtype)                                    # (bt, Doutp)


def prepare_params(wa, ba, wb, bb, wr, br, *, compute_dtype=jnp.bfloat16):
    """One-time weight prep: transpose, pad output dims to 128, fuse bb+br.

    Torch nn.Linear layout in: wa (H, Din), wb (Dout, H), wr (Dout, Din), 1-D biases.
    Run once per model, not per forward call.  The contraction (K) dims stay at
    their true sizes so x needs no feature padding.
    """
    hidden, d_in = wa.shape
    d_out = wb.shape[0]
    h_p = _round_up(hidden, _LANE)
    d_out_p = _round_up(d_out, _LANE)
    wdt = compute_dtype if compute_dtype is not None else wa.dtype

    wa_t = _pad_to(wa.T, (d_in, h_p)).astype(wdt)          # (Din, Hp)
    wb_t = _pad_to(wb.T, (h_p, d_out_p)).astype(wdt)       # (Hp, Doutp)
    wr_t = _pad_to(wr.T, (d_in, d_out_p)).astype(wdt)      # (Din, Doutp)
    ba_p = _pad_to(ba.reshape(1, hidden), (1, h_p)).astype(jnp.float32)
    bbr_p = (_pad_to(bb.reshape(1, d_out), (1, d_out_p)) +
             _pad_to(br.reshape(1, d_out), (1, d_out_p))).astype(jnp.float32)

    return dict(wa=wa_t, ba=ba_p, wb=wb_t, wr=wr_t, bbr=bbr_p,
                d_in=d_in, hidden=hidden, d_out=d_out,
                h_p=h_p, d_out_p=d_out_p, compute_dtype=wdt)


def mlp_residual_call(x, params, *, batch_tile=256, single_buffer_weights=True):
    B, d_in = x.shape
    assert d_in == params["d_in"], "input feature dim mismatch"
    h_p, d_out_p = params["h_p"], params["d_out_p"]
    cdt = params["compute_dtype"]
    out_dtype = x.dtype

    # Batch tile: 256 by default (fills the 2x256x256 MXUs on v6e/v7x), 128-aligned,
    # and capped so the batch grid has >= 2 steps (keeps both v7x TensorCores busy).
    bt = _round_up(max(batch_tile, _LANE), _LANE)
    half = _round_up(max(_round_up(B, _LANE) // 2, _LANE), _LANE)
    bt = min(bt, half)
    grid_steps = pl.cdiv(B, bt)  # partial last block handled by Pallas (masked store)

    # VMEM budget: weights single-counted when single-buffered, streamed x/out
    # double-buffered, plus fixed headroom; capped by the device's VMEM capacity.
    w_item = jnp.dtype(cdt).itemsize
    weight_bytes = (params["wa"].size + params["wb"].size + params["wr"].size) * w_item
    bias_bytes = (params["ba"].size + params["bbr"].size) * 4
    wfac = 1 if single_buffer_weights else 2
    io_bytes = (2 * bt * d_in * x.dtype.itemsize
                + 2 * bt * d_out_p * jnp.dtype(out_dtype).itemsize)
    needed = wfac * (weight_bytes + bias_bytes) + io_bytes
    vmem_limit = int(min(_vmem_cap_bytes(), max(needed + (8 << 20), 24 << 20)))

    kernel = functools.partial(_mlp_residual_kernel, compute_dtype=cdt)

    def build(weight_pipeline_mode):
        wkw = ({} if weight_pipeline_mode is None
               else {"pipeline_mode": weight_pipeline_mode})
        return pl.pallas_call(
            kernel,
            out_shape=jax.ShapeDtypeStruct((B, d_out_p), out_dtype),
            grid_spec=pltpu.PrefetchScalarGridSpec(
                num_scalar_prefetch=0,
                grid=(grid_steps,),
                in_specs=[
                    pl.BlockSpec((bt, d_in), lambda i: (i, 0)),              # x (streamed)
                    pl.BlockSpec((d_in, h_p), lambda i: (0, 0), **wkw),      # Wa^T (resident)
                    pl.BlockSpec((1, h_p), lambda i: (0, 0), **wkw),         # ba
                    pl.BlockSpec((h_p, d_out_p), lambda i: (0, 0), **wkw),   # Wb^T (resident)
                    pl.BlockSpec((d_in, d_out_p), lambda i: (0, 0), **wkw),  # Wr^T (resident)
                    pl.BlockSpec((1, d_out_p), lambda i: (0, 0), **wkw),     # bb + br
                ],
                out_specs=pl.BlockSpec((bt, d_out_p), lambda i: (i, 0)),     # lane-dense out
            ),
            compiler_params=pltpu.CompilerParams(
                dimension_semantics=("parallel",),
                vmem_limit_bytes=vmem_limit,
            ),
        )

    args = (x, params["wa"], params["ba"], params["wb"], params["wr"], params["bbr"])
    if single_buffer_weights:
        try:
            # Constant-index weights don't need double-buffering -> saves VMEM (v7x).
            y = build(pl.Buffered(1))(*args)
        except Exception:
            # Fallback only for JAX versions rejecting buffer_count=1 on pallas_call
            # BlockSpecs; correctness is identical, it just double-buffers weights.
            y = build(None)(*args)
    else:
        y = build(None)(*args)

    d_out = params["d_out"]
    return y if d_out == d_out_p else y[:, :d_out]


def mlp_residual(x, wa, ba, wb, bb, wr, br, *, batch_tile=256,
                 compute_dtype=jnp.bfloat16):
    """Convenience wrapper: prep weights (one-time cost) + run the fused kernel."""
    params = prepare_params(wa, ba, wb, bb, wr, br, compute_dtype=compute_dtype)
    return mlp_residual_call(x, params, batch_tile=batch_tile)


def _reference_bf16(x, wa, ba, wb, bb, wr, br):
    """Emulates the kernel's numerics: bf16 operands, f32 accumulation/bias adds."""
    def e(a):
        return a.astype(jnp.bfloat16).astype(jnp.float32)
    h = jnp.maximum(e(x) @ e(wa).T + ba, 0.0)
    out = e(h) @ e(wb).T + bb
    res = e(x) @ e(wr).T + br
    return out + res


if __name__ == "__main__":
    key = jax.random.PRNGKey(0)
    # B=200 exercises the partial last batch block and yields a 2-step grid
    # (both v7x TensorCores get work); feature dims exercise 128-padding of the
    # weight output dims while x's feature dim stays unpadded.
    B, D_IN, HIDDEN, D_OUT = 200, 32, 64, 16

    ks = jax.random.split(key, 7)
    x = jax.random.normal(ks[0], (B, D_IN), dtype=jnp.float32)
    # Torch nn.Linear layout: weight (out_features, in_features), bias (out_features,)
    wa = jax.random.normal(ks[1], (HIDDEN, D_IN), dtype=jnp.float32) * 0.1
    ba = jax.random.normal(ks[2], (HIDDEN,), dtype=jnp.float32) * 0.1
    wb = jax.random.normal(ks[3], (D_OUT, HIDDEN), dtype=jnp.float32) * 0.1
    bb = jax.random.normal(ks[4], (D_OUT,), dtype=jnp.float32) * 0.1
    wr = jax.random.normal(ks[5], (D_OUT, D_IN), dtype=jnp.float32) * 0.1
    br = jax.random.normal(ks[6], (D_OUT,), dtype=jnp.float32) * 0.1

    y = mlp_residual(x, wa, ba, wb, bb, wr, br)
    jax.block_until_ready(y)

    y_ref = _reference_bf16(x, wa, ba, wb, bb, wr, br)
    assert y.shape == (B, D_OUT)
    assert jnp.allclose(y, y_ref, atol=2e-2, rtol=2e-2), "mismatch vs reference"

    print("KERNEL_OK")
</pallas_src>

<mosaic_0001>
module attributes {stable_mosaic.version = 11 : i64} {
  func.func @_mlp_residual_kernel(%arg0: i32, %arg1: memref<128x32xf32, #tpu.memory_space<vmem>>, %arg2: memref<32x128xbf16, #tpu.memory_space<vmem>>, %arg3: memref<1x128xf32, #tpu.memory_space<vmem>>, %arg4: memref<128x128xbf16, #tpu.memory_space<vmem>>, %arg5: memref<32x128xbf16, #tpu.memory_space<vmem>>, %arg6: memref<1x128xf32, #tpu.memory_space<vmem>>, %arg7: memref<128x128xf32, #tpu.memory_space<vmem>>) attributes {dimension_semantics = [#tpu.dimension_semantics<parallel>], iteration_bounds = array<i64: 2>, scalar_prefetch = 0 : i64, scratch_operands = 0 : i64, tpu.core_type = #tpu.core_type<tc>, window_params = [{transform_indices = @transform_0, window_bounds = array<i64: 128, 32>}, {pipeline_mode = #tpu.pipeline_mode<synchronous>, transform_indices = @transform_1, window_bounds = array<i64: 32, 128>}, {pipeline_mode = #tpu.pipeline_mode<synchronous>, transform_indices = @transform_2, window_bounds = array<i64: 1, 128>}, {pipeline_mode = #tpu.pipeline_mode<synchronous>, transform_indices = @transform_3, window_bounds = array<i64: 128, 128>}, {pipeline_mode = #tpu.pipeline_mode<synchronous>, transform_indices = @transform_4, window_bounds = array<i64: 32, 128>}, {pipeline_mode = #tpu.pipeline_mode<synchronous>, transform_indices = @transform_5, window_bounds = array<i64: 1, 128>}, {transform_indices = @transform_6, window_bounds = array<i64: 128, 128>}]} {
    %c0 = arith.constant 0 : index
    %c0_0 = arith.constant 0 : index
    %0 = vector.load %arg1[%c0, %c0_0] : memref<128x32xf32, #tpu.memory_space<vmem>>, vector<128x32xf32>
    %1 = arith.truncf %0 : vector<128x32xf32> to vector<128x32xbf16>
    %c0_1 = arith.constant 0 : index
    %c0_2 = arith.constant 0 : index
    %2 = vector.load %arg2[%c0_1, %c0_2] : memref<32x128xbf16, #tpu.memory_space<vmem>>, vector<32x128xbf16>
    %cst = arith.constant dense<0.000000e+00> : vector<128x128xf32>
    %3 = tpu.matmul %1, %2, %cst {dimension_numbers = #tpu.dot_dimension_numbers<[1], [0], [0], [1], [0, 0, 1, 1], [], []>} : vector<128x32xbf16>, vector<32x128xbf16>, vector<128x128xf32> -> vector<128x128xf32>
    %c0_3 = arith.constant 0 : index
    %c0_4 = arith.constant 0 : index
    %4 = vector.load %arg3[%c0_3, %c0_4] : memref<1x128xf32, #tpu.memory_space<vmem>>, vector<1x128xf32>
    %5 = vector.broadcast %4 : vector<1x128xf32> to vector<128x128xf32>
    %6 = arith.addf %3, %5 : vector<128x128xf32>
    %cst_5 = arith.constant 0.000000e+00 : f32
    %7 = vector.broadcast %cst_5 : f32 to vector<128x128xf32>
    %8 = arith.maximumf %6, %7 : vector<128x128xf32>
    %9 = arith.truncf %8 : vector<128x128xf32> to vector<128x128xbf16>
    %c0_6 = arith.constant 0 : index
    %c0_7 = arith.constant 0 : index
    %10 = vector.load %arg4[%c0_6, %c0_7] : memref<128x128xbf16, #tpu.memory_space<vmem>>, vector<128x128xbf16>
    %cst_8 = arith.constant dense<0.000000e+00> : vector<128x128xf32>
    %11 = tpu.matmul %9, %10, %cst_8 {dimension_numbers = #tpu.dot_dimension_numbers<[1], [0], [0], [1], [0, 0, 1, 1], [], []>} : vector<128x128xbf16>, vector<128x128xbf16>, vector<128x128xf32> -> vector<128x128xf32>
    %c0_9 = arith.constant 0 : index
    %c0_10 = arith.constant 0 : index
    %12 = vector.load %arg5[%c0_9, %c0_10] : memref<32x128xbf16, #tpu.memory_space<vmem>>, vector<32x128xbf16>
    %cst_11 = arith.constant dense<0.000000e+00> : vector<128x128xf32>
    %13 = tpu.matmul %1, %12, %cst_11 {dimension_numbers = #tpu.dot_dimension_numbers<[1], [0], [0], [1], [0, 0, 1, 1], [], []>} : vector<128x32xbf16>, vector<32x128xbf16>, vector<128x128xf32> -> vector<128x128xf32>
    %14 = arith.addf %11, %13 : vector<128x128xf32>
    %c0_12 = arith.constant 0 : index
    %c0_13 = arith.constant 0 : index
    %15 = vector.load %arg6[%c0_12, %c0_13] : memref<1x128xf32, #tpu.memory_space<vmem>>, vector<1x128xf32>
    %16 = vector.broadcast %15 : vector<1x128xf32> to vector<128x128xf32>
    %17 = arith.addf %14, %16 : vector<128x128xf32>
    %c0_14 = arith.constant 0 : index
    %c0_15 = arith.constant 0 : index
    %18 = vector.load %arg7[%c0_14, %c0_15] : memref<128x128xf32, #tpu.memory_space<vmem>>, vector<128x128xf32>
    tpu.vector_store %arg7[%c0_14, %c0_15], %17 {strides = array<i32>} : memref<128x128xf32, #tpu.memory_space<vmem>>, vector<128x128xf32>,
    return
  }
  func.func @transform_0(%arg0: i32) -> (i32, i32) {
    %c0_i32 = arith.constant 0 : i32
    %c0_i32_0 = arith.constant 0 : i32
    return %arg0, %c0_i32 : i32, i32
  }
  func.func @transform_1(%arg0: i32) -> (i32, i32) {
    %c0_i32 = arith.constant 0 : i32
    %c0_i32_0 = arith.constant 0 : i32
    %c0_i32_1 = arith.constant 0 : i32
    return %c0_i32, %c0_i32_0 : i32, i32
  }
  func.func @transform_2(%arg0: i32) -> (i32, i32) {
    %c0_i32 = arith.constant 0 : i32
    %c0_i32_0 = arith.constant 0 : i32
    %c0_i32_1 = arith.constant 0 : i32
    return %c0_i32, %c0_i32_0 : i32, i32
  }
  func.func @transform_3(%arg0: i32) -> (i32, i32) {
    %c0_i32 = arith.constant 0 : i32
    %c0_i32_0 = arith.constant 0 : i32
    %c0_i32_1 = arith.constant 0 : i32
    return %c0_i32, %c0_i32_0 : i32, i32
  }
  func.func @transform_4(%arg0: i32) -> (i32, i32) {
    %c0_i32 = arith.constant 0 : i32
    %c0_i32_0 = arith.constant 0 : i32
    %c0_i32_1 = arith.constant 0 : i32
    return %c0_i32, %c0_i32_0 : i32, i32
  }
  func.func @transform_5(%arg0: i32) -> (i32, i32) {
    %c0_i32 = arith.constant 0 : i32
    %c0_i32_0 = arith.constant 0 : i32
    %c0_i32_1 = arith.constant 0 : i32
    return %c0_i32, %c0_i32_0 : i32, i32
  }
  func.func @transform_6(%arg0: i32) -> (i32, i32) {
    %c0_i32 = arith.constant 0 : i32
    %c0_i32_0 = arith.constant 0 : i32
    return %arg0, %c0_i32 : i32, i32
  }
}

module attributes {stable_mosaic.version = 11 : i64} {
  func.func @_mlp_residual_kernel(%arg0: i32, %arg1: memref<128x32xf32, #tpu.memory_space<vmem>>, %arg2: memref<32x128xbf16, #tpu.memory_space<vmem>>, %arg3: memref<1x128xf32, #tpu.memory_space<vmem>>, %arg4: memref<128x128xbf16, #tpu.memory_space<vmem>>, %arg5: memref<32x128xbf16, #tpu.memory_space<vmem>>, %arg6: memref<1x128xf32, #tpu.memory_space<vmem>>, %arg7: memref<128x128xf32, #tpu.memory_space<vmem>>) attributes {dimension_semantics = [#tpu.dimension_semantics<parallel>], iteration_bounds = array<i64: 2>, scalar_prefetch = 0 : i64, scratch_operands = 0 : i64, tpu.core_type = #tpu.core_type<tc>, window_params = [{transform_indices = @transform_0, window_bounds = array<i64: 128, 32>}, {pipeline_mode = #tpu.pipeline_mode<synchronous>, transform_indices = @transform_1, window_bounds = array<i64: 32, 128>}, {pipeline_mode = #tpu.pipeline_mode<synchronous>, transform_indices = @transform_2, window_bounds = array<i64: 1, 128>}, {pipeline_mode = #tpu.pipeline_mode<synchronous>, transform_indices = @transform_3, window_bounds = array<i64: 128, 128>}, {pipeline_mode = #tpu.pipeline_mode<synchronous>, transform_indices = @transform_4, window_bounds = array<i64: 32, 128>}, {pipeline_mode = #tpu.pipeline_mode<synchronous>, transform_indices = @transform_5, window_bounds = array<i64: 1, 128>}, {transform_indices = @transform_6, window_bounds = array<i64: 128, 128>}]} {
    %c0 = arith.constant 0 : index
    %c0_0 = arith.constant 0 : index
    %0 = vector.load %arg1[%c0, %c0_0] : memref<128x32xf32, #tpu.memory_space<vmem>>, vector<128x32xf32>
    %1 = arith.truncf %0 : vector<128x32xf32> to vector<128x32xbf16>
    %c0_1 = arith.constant 0 : index
    %c0_2 = arith.constant 0 : index
    %2 = vector.load %arg2[%c0_1, %c0_2] : memref<32x128xbf16, #tpu.memory_space<vmem>>, vector<32x128xbf16>
    %cst = arith.constant dense<0.000000e+00> : vector<128x128xf32>
    %3 = tpu.matmul %1, %2, %cst {dimension_numbers = #tpu.dot_dimension_numbers<[1], [0], [0], [1], [0, 0, 1, 1], [], []>} : vector<128x32xbf16>, vector<32x128xbf16>, vector<128x128xf32> -> vector<128x128xf32>
    %c0_3 = arith.constant 0 : index
    %c0_4 = arith.constant 0 : index
    %4 = vector.load %arg3[%c0_3, %c0_4] : memref<1x128xf32, #tpu.memory_space<vmem>>, vector<1x128xf32>
    %5 = vector.broadcast %4 : vector<1x128xf32> to vector<128x128xf32>
    %6 = arith.addf %3, %5 : vector<128x128xf32>
    %cst_5 = arith.constant 0.000000e+00 : f32
    %7 = vector.broadcast %cst_5 : f32 to vector<128x128xf32>
    %8 = arith.maximumf %6, %7 : vector<128x128xf32>
    %9 = arith.truncf %8 : vector<128x128xf32> to vector<128x128xbf16>
    %c0_6 = arith.constant 0 : index
    %c0_7 = arith.constant 0 : index
    %10 = vector.load %arg4[%c0_6, %c0_7] : memref<128x128xbf16, #tpu.memory_space<vmem>>, vector<128x128xbf16>
    %cst_8 = arith.constant dense<0.000000e+00> : vector<128x128xf32>
    %11 = tpu.matmul %9, %10, %cst_8 {dimension_numbers = #tpu.dot_dimension_numbers<[1], [0], [0], [1], [0, 0, 1, 1], [], []>} : vector<128x128xbf16>, vector<128x128xbf16>, vector<128x128xf32> -> vector<128x128xf32>
    %c0_9 = arith.constant 0 : index
    %c0_10 = arith.constant 0 : index
    %12 = vector.load %arg5[%c0_9, %c0_10] : memref<32x128xbf16, #tpu.memory_space<vmem>>, vector<32x128xbf16>
    %cst_11 = arith.constant dense<0.000000e+00> : vector<128x128xf32>
    %13 = tpu.matmul %1, %12, %cst_11 {dimension_numbers = #tpu.dot_dimension_numbers<[1], [0], [0], [1], [0, 0, 1, 1], [], []>} : vector<128x32xbf16>, vector<32x128xbf16>, vector<128x128xf32> -> vector<128x128xf32>
    %14 = arith.addf %11, %13 : vector<128x128xf32>
    %c0_12 = arith.constant 0 : index
    %c0_13 = arith.constant 0 : index
    %15 = vector.load %arg6[%c0_12, %c0_13] : memref<1x128xf32, #tpu.memory_space<vmem>>, vector<1x128xf32>
    %16 = vector.broadcast %15 : vector<1x128xf32> to vector<128x128xf32>
    %17 = arith.addf %14, %16 : vector<128x128xf32>
    %c0_14 = arith.constant 0 : index
    %c0_15 = arith.constant 0 : index
    %18 = vector.load %arg7[%c0_14, %c0_15] : memref<128x128xf32, #tpu.memory_space<vmem>>, vector<128x128xf32>
    tpu.vector_store %arg7[%c0_14, %c0_15], %17 {strides = array<i32>} : memref<128x128xf32, #tpu.memory_space<vmem>>, vector<128x128xf32>,
    return
  }
  func.func @transform_0(%arg0: i32) -> (i32, i32) {
    %c0_i32 = arith.constant 0 : i32
    %c0_i32_0 = arith.constant 0 : i32
    return %arg0, %c0_i32 : i32, i32
  }
  func.func @transform_1(%arg0: i32) -> (i32, i32) {
    %c0_i32 = arith.constant 0 : i32
    %c0_i32_0 = arith.constant 0 : i32
    %c0_i32_1 = arith.constant 0 : i32
    return %c0_i32, %c0_i32_0 : i32, i32
  }
  func.func @transform_2(%arg0: i32) -> (i32, i32) {
    %c0_i32 = arith.constant 0 : i32
    %c0_i32_0 = arith.constant 0 : i32
    %c0_i32_1 = arith.constant 0 : i32
    return %c0_i32, %c0_i32_0 : i32, i32
  }
  func.func @transform_3(%arg0: i32) -> (i32, i32) {
    %c0_i32 = arith.constant 0 : i32
    %c0_i32_0 = arith.constant 0 : i32
    %c0_i32_1 = arith.constant 0 : i32
    return %c0_i32, %c0_i32_0 : i32, i32
  }
  func.func @transform_4(%arg0: i32) -> (i32, i32) {
    %c0_i32 = arith.constant 0 : i32
    %c0_i32_0 = arith.constant 0 : i32
    %c0_i32_1 = arith.constant 0 : i32
    return %c0_i32, %c0_i32_0 : i32, i32
  }
  func.func @transform_5(%arg0: i32) -> (i32, i32) {
    %c0_i32 = arith.constant 0 : i32
    %c0_i32_0 = arith.constant 0 : i32
    %c0_i32_1 = arith.constant 0 : i32
    return %c0_i32, %c0_i32_0 : i32, i32
  }
  func.func @transform_6(%arg0: i32) -> (i32, i32) {
    %c0_i32 = arith.constant 0 : i32
    %c0_i32_0 = arith.constant 0 : i32
    return %arg0, %c0_i32 : i32, i32
  }
}

</mosaic_0001>

<llo_original>
// kernel: tpu_custom_call.1
$region0: #{tpu_custom_call.1}
  #allocation0 [shape = 'u32[]', space=smem, size = 0x4, offset = 0x4, fixed_abs, tag = 'smem constant byte address 0x4 - core index']
  #allocation1 [shape = 'u32[72,128]{1,0:T(1,128)}', space=vmem, size = 0x9000, scoped, tag = 'internal scratch']
  %s0 = inlined_call_operand.vmem [shape: f32[200,32], index: 0, kind: input, shape index: {}]
  %s1 = inlined_call_operand.vmem [shape: bf16[32,128], index: 1, kind: input, shape index: {}]
  %s2 = inlined_call_operand.vmem [shape: f32[1,128], index: 2, kind: input, shape index: {}]
  %s3 = inlined_call_operand.vmem [shape: bf16[128,128], index: 3, kind: input, shape index: {}]
  %s4 = inlined_call_operand.vmem [shape: bf16[32,128], index: 4, kind: input, shape index: {}]
  %s5 = inlined_call_operand.vmem [shape: f32[1,128], index: 5, kind: input, shape index: {}]
  %s6 = inlined_call_operand.hbm [shape: f32[200,128], index: 6, kind: output, shape index: {}]
  %s7 = sld [smem:[#allocation0]]
  $region57: #{tpu_custom_call.1} parent=0
    _
  %s9 = ssub.s32 1, %s7
  %s10 = scalar_select 0, %s9, %s7
  $region1: #{tpu_custom_call.1} parent=0
    #allocation2 [shape = 'u8[131072]{0}', space=vmem, size = 0x20000, scoped, tag = 'output window, operand 0']
    #allocation3 [shape = 's32[2]{0}', space=sflag, size = 0x8, scoped, tag = 'scoped memory for tpu_custom_call.1']
    %11 = vsyncpa [#allocation3], 0
    %s12 = scalar_lea.sflag [#allocation3], 1
    %13 = vsyncpa %s12, 0
    loop: start=0, step=1, limit=4
    $region2: #{tpu_custom_call.1} parent=1 // loop_pre_header
      _
    $region3: #{tpu_custom_call.1} parent=1 // loop_header
      %s15 = sphi 0, %s19
      %p16 = scmp.ge.s32.totalorder %s15, 4
      %s25 = sphi 0, %s27
      %s28 = sphi 0, %s25
      %s29 = sphi 0, %s28
      %s45 = sphi 0, %s29
      %s49 = sphi 0, %s49
      %s51 = sphi 0, %s49
      %s52 = sphi 0, %s51
      %s66 = sphi 0, %s52
      %s70 = sphi 0, %s70
      %s72 = sphi 0, %s70
      %s73 = sphi 0, %s72
      %s87 = sphi 0, %s73
      %s91 = sphi 0, %s91
      %s93 = sphi 0, %s91
      %s94 = sphi 0, %s93
      %s108 = sphi 0, %s94
      %s112 = sphi 0, %s112
      %s114 = sphi 0, %s112
      %s115 = sphi 0, %s114
      %s129 = sphi 0, %s115
      %s133 = sphi 0, %s133
      %s135 = sphi 0, %s133
      %s136 = sphi 0, %s135
      %s150 = sphi 0, %s136
      %s156 = sphi 0, %s158
      %s159 = sphi 0, %s156
      %s160 = sphi 0, %s159
      %s176 = sphi 0, %s160
    $region4: #{tpu_custom_call.1} parent=1 // loop_header_branch
      %18 = sbr.rel (%p16) target = $region8
    $region5: #{tpu_custom_call.1} parent=1 // loop_body
      %s20 = ssub.s32 %s15, 1
      %s21 = ssub.s32 %s15, 2
      %s22 = sadd.s32 %s15, 1
      %s23 = ssub.s32 %s15, %s22
      %p24 = scmp.eq.s32.totalorder %s23, 0
      %s26 = sadd.s32 %s25, 1
      %s27 = scalar_select %p24, %s25, %s26
      %p30 = pneg %p24
      %p31 = scmp.eq.s32.totalorder %s15, 1
      %p32 = por %p30, %p31
      %p33 = scmp.ne.s32.totalorder %s25, %s28
      %p34 = scmp.eq.s32.totalorder %s15, 0
      %p35 = por %p33, %p34
      %p36 = scmp.ne.s32.totalorder %s25, %s28
      %p37 = scmp.eq.s32.totalorder %s20, 1
      %p38 = por %p36, %p37
      %p39 = scmp.ne.s32.totalorder %s28, %s29
      %p40 = scmp.eq.s32.totalorder %s20, 0
      %p41 = por %p39, %p40
      %p42 = scmp.ne.s32.totalorder %s28, %s29
      %p43 = scmp.eq.s32.totalorder %s21, 1
      %p44 = por %p42, %p43
      %p46 = scmp.ne.s32.totalorder %s29, %s45
      %p47 = scmp.eq.s32.totalorder %s21, 0
      %p48 = por %p46, %p47
      %s50 = sadd.s32 %s49, 1
      %p53 = scmp.eq.s32.totalorder %s15, 1
      %p54 = scmp.ne.s32.totalorder %s49, %s51
      %p55 = scmp.eq.s32.totalorder %s15, 0
      %p56 = por %p54, %p55
      %p57 = scmp.ne.s32.totalorder %s49, %s51
      %p58 = scmp.eq.s32.totalorder %s20, 1
      %p59 = por %p57, %p58
      %p60 = scmp.ne.s32.totalorder %s51, %s52
      %p61 = scmp.eq.s32.totalorder %s20, 0
      %p62 = por %p60, %p61
      %p63 = scmp.ne.s32.totalorder %s51, %s52
      %p64 = scmp.eq.s32.totalorder %s21, 1
      %p65 = por %p63, %p64
      %p67 = scmp.ne.s32.totalorder %s52, %s66
      %p68 = scmp.eq.s32.totalorder %s21, 0
      %p69 = por %p67, %p68
      %s71 = sadd.s32 %s70, 1
      %p74 = scmp.eq.s32.totalorder %s15, 1
      %p75 = scmp.ne.s32.totalorder %s70, %s72
      %p76 = scmp.eq.s32.totalorder %s15, 0
      %p77 = por %p75, %p76
      %p78 = scmp.ne.s32.totalorder %s70, %s72
      %p79 = scmp.eq.s32.totalorder %s20, 1
      %p80 = por %p78, %p79
      %p81 = scmp.ne.s32.totalorder %s72, %s73
      %p82 = scmp.eq.s32.totalorder %s20, 0
      %p83 = por %p81, %p82
      %p84 = scmp.ne.s32.totalorder %s72, %s73
      %p85 = scmp.eq.s32.totalorder %s21, 1
      %p86 = por %p84, %p85
      %p88 = scmp.ne.s32.totalorder %s73, %s87
      %p89 = scmp.eq.s32.totalorder %s21, 0
      %p90 = por %p88, %p89
      %s92 = sadd.s32 %s91, 1
      %p95 = scmp.eq.s32.totalorder %s15, 1
      %p96 = scmp.ne.s32.totalorder %s91, %s93
      %p97 = scmp.eq.s32.totalorder %s15, 0
      %p98 = por %p96, %p97
      %p99 = scmp.ne.s32.totalorder %s91, %s93
      %p100 = scmp.eq.s32.totalorder %s20, 1
      %p101 = por %p99, %p100
      %p102 = scmp.ne.s32.totalorder %s93, %s94
      %p103 = scmp.eq.s32.totalorder %s20, 0
      %p104 = por %p102, %p103
      %p105 = scmp.ne.s32.totalorder %s93, %s94
      %p106 = scmp.eq.s32.totalorder %s21, 1
      %p107 = por %p105, %p106
      %p109 = scmp.ne.s32.totalorder %s94, %s108
      %p110 = scmp.eq.s32.totalorder %s21, 0
      %p111 = por %p109, %p110
      %s113 = sadd.s32 %s112, 1
      %p116 = scmp.eq.s32.totalorder %s15, 1
      %p117 = scmp.ne.s32.totalorder %s112, %s114
      %p118 = scmp.eq.s32.totalorder %s15, 0
      %p119 = por %p117, %p118
      %p120 = scmp.ne.s32.totalorder %s112, %s114
      %p121 = scmp.eq.s32.totalorder %s20, 1
      %p122 = por %p120, %p121
      %p123 = scmp.ne.s32.totalorder %s114, %s115
      %p124 = scmp.eq.s32.totalorder %s20, 0
      %p125 = por %p123, %p124
      %p126 = scmp.ne.s32.totalorder %s114, %s115
      %p127 = scmp.eq.s32.totalorder %s21, 1
      %p128 = por %p126, %p127
      %p130 = scmp.ne.s32.totalorder %s115, %s129
      %p131 = scmp.eq.s32.totalorder %s21, 0
      %p132 = por %p130, %p131
      %s134 = sadd.s32 %s133, 1
      %p137 = scmp.eq.s32.totalorder %s15, 1
      %p138 = scmp.ne.s32.totalorder %s133, %s135
      %p139 = scmp.eq.s32.totalorder %s15, 0
      %p140 = por %p138, %p139
      %p141 = scmp.ne.s32.totalorder %s133, %s135
      %p142 = scmp.eq.s32.totalorder %s20, 1
      %p143 = por %p141, %p142
      %p144 = scmp.ne.s32.totalorder %s135, %s136
      %p145 = scmp.eq.s32.totalorder %s20, 0
      %p146 = por %p144, %p145
      %p147 = scmp.ne.s32.totalorder %s135, %s136
      %p148 = scmp.eq.s32.totalorder %s21, 1
      %p149 = por %p147, %p148
      %p151 = scmp.ne.s32.totalorder %s136, %s150
      %p152 = scmp.eq.s32.totalorder %s21, 0
      %p153 = por %p151, %p152
      %s154 = ssub.s32 %s15, %s22
      %p155 = scmp.eq.s32.totalorder %s154, 0
      %s157 = sadd.s32 %s156, 1
      %s158 = scalar_select %p155, %s156, %s157
      %p161 = pneg %p155
      %p162 = scmp.eq.s32.totalorder %s15, 1
      %p163 = por %p161, %p162
      %p164 = scmp.ne.s32.totalorder %s156, %s159
      %p165 = scmp.eq.s32.totalorder %s15, 0
      %p166 = por %p164, %p165
      %p167 = scmp.ne.s32.totalorder %s156, %s159
      %p168 = scmp.eq.s32.totalorder %s20, 1
      %p169 = por %p167, %p168
      %p170 = scmp.ne.s32.totalorder %s159, %s160
      %p171 = scmp.eq.s32.totalorder %s20, 0
      %p172 = por %p170, %p171
      %p173 = scmp.ne.s32.totalorder %s159, %s160
      %p174 = scmp.eq.s32.totalorder %s21, 1
      %p175 = por %p173, %p174
      %p177 = scmp.ne.s32.totalorder %s160, %s176
      %p178 = scmp.eq.s32.totalorder %s21, 0
      %p179 = por %p177, %p178
      %p180 = scmp.le.s32.totalorder 1, %s15
      %p181 = scmp.lt.s32.totalorder %s15, 3
      %p182 = pnand %p180, %p181
      %p183 = pneg %p182
      // Predicated region
      $region9: #{tpu_custom_call.1} parent=5 // pred_check
        _
      $region10: #{tpu_custom_call.1} parent=5 // pred_check_branch
        %185 = sbr.rel (%p182) target = $region12
      $region11: #{tpu_custom_call.1} parent=5 // pred_region
        %s186 = ssub.s32 %s15, 1
        // Predicated region
        $region13: #{tpu_custom_call.1} parent=11 // pred_check
          %p187 = pneg %p62
        $region14: #{tpu_custom_call.1} parent=11 // pred_check_branch
          %189 = sbr.rel (%p187) target = $region16
        $region15: #{tpu_custom_call.1} parent=11 // pred_region
          _
        $region16: #{tpu_custom_call.1} parent=11 // pred_fallthru
          _
        // Predicated region
        $region17: #{tpu_custom_call.1} parent=11 // pred_check
          %p190 = pneg %p83
        $region18: #{tpu_custom_call.1} parent=11 // pred_check_branch
          %192 = sbr.rel (%p190) target = $region20
        $region19: #{tpu_custom_call.1} parent=11 // pred_region
          _
        $region20: #{tpu_custom_call.1} parent=11 // pred_fallthru
          _
        // Predicated region
        $region21: #{tpu_custom_call.1} parent=11 // pred_check
          %p193 = pneg %p104
        $region22: #{tpu_custom_call.1} parent=11 // pred_check_branch
          %195 = sbr.rel (%p193) target = $region24
        $region23: #{tpu_custom_call.1} parent=11 // pred_region
          _
        $region24: #{tpu_custom_call.1} parent=11 // pred_fallthru
          _
        // Predicated region
        $region25: #{tpu_custom_call.1} parent=11 // pred_check
          %p196 = pneg %p125
        $region26: #{tpu_custom_call.1} parent=11 // pred_check_branch
          %198 = sbr.rel (%p196) target = $region28
        $region27: #{tpu_custom_call.1} parent=11 // pred_region
          _
        $region28: #{tpu_custom_call.1} parent=11 // pred_fallthru
          _
        // Predicated region
        $region29: #{tpu_custom_call.1} parent=11 // pred_check
          %p199 = pneg %p146
        $region30: #{tpu_custom_call.1} parent=11 // pred_check_branch
          %201 = sbr.rel (%p199) target = $region32
        $region31: #{tpu_custom_call.1} parent=11 // pred_region
          _
        $region32: #{tpu_custom_call.1} parent=11 // pred_fallthru
          _
      $region12: #{tpu_custom_call.1} parent=5 // pred_fallthru
        _
      %p202 = scmp.lt.s32.totalorder %s15, 2
      // Predicated region
      $region33: #{tpu_custom_call.1} parent=5 // pred_check
        %p203 = pneg %p202
      $region34: #{tpu_custom_call.1} parent=5 // pred_check_branch
        %205 = sbr.rel (%p203) target = $region36
      $region35: #{tpu_custom_call.1} parent=5 // pred_region
        // Predicated region
        $region37: #{tpu_custom_call.1} parent=35 // pred_check
          %p206 = pneg %p35
        $region38: #{tpu_custom_call.1} parent=35 // pred_check_branch
          %208 = sbr.rel (%p206) target = $region40
        $region39: #{tpu_custom_call.1} parent=35 // pred_region
          %s209 = smul.u32 16, %s15
          %s210 = ssub.s32 25, %s209
          %p211 = scmp.lt.s32.totalorder %s210, 16
          %s212 = scalar_select %p211, %s210, 16
          %s213 = smul.u32 8, %s212
          %p214 = scmp.lt.s32.totalorder %s209, 24
          %s215 = scalar_select %p214, %s209, 24
          %s216 = smul.addr %s215, 8
          %s217 = scalar_lea.vmem %s0, %s216
          %s218 = smul.u32 16, %s15
          %s219 = ssub.s32 25, %s218
          %p220 = scmp.lt.s32.totalorder %s219, 16
          %s221 = scalar_select %p220, %s219, 16
          %s222 = smul.u32 8, %s221
        $region40: #{tpu_custom_call.1} parent=35 // pred_fallthru
          _
      $region36: #{tpu_custom_call.1} parent=5 // pred_fallthru
        _
      %p223 = scmp.le.s32.totalorder 1, %s15
      %p224 = scmp.lt.s32.totalorder %s15, 3
      %p225 = pnand %p223, %p224
      %p226 = pneg %p225
      // Predicated region
      $region41: #{tpu_custom_call.1} parent=5 // pred_check
        _
      $region42: #{tpu_custom_call.1} parent=5 // pred_check_branch
        %228 = sbr.rel (%p225) target = $region44
      $region43: #{tpu_custom_call.1} parent=5 // pred_region
        %s229 = ssub.s32 %s15, 1
        %s230 = smul.u32 16, %s20
        %s231 = ssub.s32 25, %s230
        %p232 = scmp.lt.s32.totalorder %s231, 16
        %s233 = scalar_select %p232, %s231, 16
        %s234 = smul.u32 8, %s233
        %p235 = scmp.lt.s32.totalorder %s230, 24
        %s236 = scalar_select %p235, %s230, 24
        %s237 = smul.addr %s236, 8
        %s238 = scalar_lea.vmem %s0, %s237
        %p239 = pneg %p41
        %p240 = pneg %p38
        %p241 = pneg %p62
        %p242 = pneg %p59
        %p243 = pneg %p83
        %p244 = pneg %p80
        %p245 = pneg %p104
        %p246 = pneg %p101
        %p247 = pneg %p125
        %p248 = pneg %p122
        %p249 = pneg %p146
        %p250 = pneg %p143
        %p251 = pneg %p172
        %p252 = pneg %p169
        %s253 = sand.u32 %s159, 1
        %s254 = scalar_lea.sflag [#allocation3], %s253
        %s255 = sand.u32 %s159, 1
        %s256 = smul.addr %s255, 128
        %s257 = scalar_lea.vmem [#allocation2], %s256
        %s258 = smul.u32 16, %s20
        %s259 = ssub.s32 25, %s258
        %p260 = scmp.lt.s32.totalorder %s259, 16
        %s261 = scalar_select %p260, %s259, 16
        %s262 = smul.u32 8, %s261
        %p263 = scmp.lt.s32.totalorder %s258, 24
        %s264 = scalar_select %p263, %s258, 24
        %s265 = smul.addr %s264, 8
        %s266 = scalar_lea.vmem %s0, %s265
        %s267 = smul.u32 16, %s20
        %s268 = ssub.s32 25, %s267
        %p269 = scmp.lt.s32.totalorder %s268, 16
        %s270 = scalar_select %p269, %s268, 16
        %s271 = smul.u32 8, %s270
        %s272 = smul.u32 16, %s20
        %s273 = ssub.s32 25, %s272
        %p274 = scmp.lt.s32.totalorder %s273, 16
        %s275 = scalar_select %p274, %s273, 16
        %s276 = smul.u32 8, %s275
        %v278 = vld [vmem:[%s266] sm:$0xff]
        %v279 = vld [vmem:[%s266 + $0x8] sm:$0xff]
        %v280 = vld [vmem:[%s266 + $0x10] sm:$0xff]
        %v281 = vld [vmem:[%s266 + $0x18] sm:$0xff]
        %v282 = vld [vmem:[%s266 + $0x20] sm:$0xff]
        %v283 = vld [vmem:[%s266 + $0x28] sm:$0xff]
        %v284 = vld [vmem:[%s266 + $0x30] sm:$0xff]
        %v285 = vld [vmem:[%s266 + $0x38] sm:$0xff]
        %v286 = vld [vmem:[%s266 + $0x40] sm:$0xff]
        %v287 = vld [vmem:[%s266 + $0x48] sm:$0xff]
        %v288 = vld [vmem:[%s266 + $0x50] sm:$0xff]
        %v289 = vld [vmem:[%s266 + $0x58] sm:$0xff]
        %v290 = vld [vmem:[%s266 + $0x60] sm:$0xff]
        %v291 = vld [vmem:[%s266 + $0x68] sm:$0xff]
        %v292 = vld [vmem:[%s266 + $0x70] sm:$0xff]
        %v293 = vld [vmem:[%s266 + $0x78] sm:$0xff]
        %v294 = vpack.c.bf16 %v279, %v278
        %v295 = vpack.c.bf16 %v281, %v280
        %v296 = vpack.c.bf16 %v283, %v282
        %v297 = vpack.c.bf16 %v285, %v284
        %v298 = vpack.c.bf16 %v287, %v286
        %v299 = vpack.c.bf16 %v289, %v288
        %v300 = vpack.c.bf16 %v291, %v290
        %v301 = vpack.c.bf16 %v293, %v292
        %v302 = vld [vmem:[%s1] sm:$0xf]
        %v303 = vld [vmem:[%s1 + $0x4] sm:$0xf]
        %v304 = vld [vmem:[%s1 + $0x8] sm:$0xf]
        %v305 = vld [vmem:[%s1 + $0xc] sm:$0xf]
        %v306 = vld [vmem:[%s2] sm:$0x1]
        %v308 = vperm.slane %v306, 0
        %v314 = vunpack.c.l.b16 %v302
        %v315 = vunpack.c.l.b16 %v303
        %v316 = vunpack.c.l.b16 %v304
        %v317 = vunpack.c.l.b16 %v305
        %v318 = vpack.c.b16 %v315, %v314
        %v319 = vpack.c.b16 %v317, %v316
        %vm322 = vcmask 261120
        %v324 = vsel %vm322, %v294, 0
        %v327 = vsel %vm322, %v295, 0
        %v330 = vsel %vm322, %v296, 0
        %v333 = vsel %vm322, %v297, 0
        %v336 = vsel %vm322, %v298, 0
        %v339 = vsel %vm322, %v299, 0
        %v342 = vsel %vm322, %v300, 0
        %v345 = vsel %vm322, %v301, 0
        %347 = vmatpush.bf16.msra.mxu0 0
        %348 = vmatpush.bf16.msra.mxu0 0
        %349 = vmatpush.bf16.msra.mxu0 0
        %350 = vmatpush.bf16.msra.mxu0 0
        %351 = vmatpush.bf16.msra.mxu0 0
        %352 = vmatpush.bf16.msra.mxu0 0
        %353 = vmatpush.bf16.msra.mxu0 %v319
        %354 = vmatpush.bf16.msra.mxu0 %v318
        %355 = vmatmul.bf16.gmra.mxu0 %v324
        %v356 = vpop.f32.mrf.mxu0
        %v357 = vadd.f32 %v308, %v356
        %v358 = vpop.f32.mrf.mxu0
        %v359 = vadd.f32 %v308, %v358
        %360 = vmatmul.bf16.gmra.mxu0 %v327
        %v361 = vpop.f32.mrf.mxu0
        %v362 = vadd.f32 %v308, %v361
        %v363 = vpop.f32.mrf.mxu0
        %v364 = vadd.f32 %v308, %v363
        %365 = vmatmul.bf16.gmra.mxu0 %v330
        %v366 = vpop.f32.mrf.mxu0
        %v367 = vadd.f32 %v308, %v366
        %v368 = vpop.f32.mrf.mxu0
        %v369 = vadd.f32 %v308, %v368
        %370 = vmatmul.bf16.gmra.mxu0 %v333
        %v371 = vpop.f32.mrf.mxu0
        %v372 = vadd.f32 %v308, %v371
        %v373 = vpop.f32.mrf.mxu0
        %v374 = vadd.f32 %v308, %v373
        %375 = vmatmul.bf16.gmra.mxu0 %v336
        %v376 = vpop.f32.mrf.mxu0
        %v377 = vadd.f32 %v308, %v376
        %v378 = vpop.f32.mrf.mxu0
        %v379 = vadd.f32 %v308, %v378
        %380 = vmatmul.bf16.gmra.mxu0 %v339
        %v381 = vpop.f32.mrf.mxu0
        %v382 = vadd.f32 %v308, %v381
        %v383 = vpop.f32.mrf.mxu0
        %v384 = vadd.f32 %v308, %v383
        %385 = vmatmul.bf16.gmra.mxu0 %v342
        %v386 = vpop.f32.mrf.mxu0
        %v387 = vadd.f32 %v308, %v386
        %v388 = vpop.f32.mrf.mxu0
        %v389 = vadd.f32 %v308, %v388
        %390 = vmatmul.bf16.gmra.mxu0 %v345
        %v391 = vpop.f32.mrf.mxu0
        %v392 = vadd.f32 %v308, %v391
        %v393 = vpop.f32.mrf.mxu0
        %v394 = vadd.f32 %v308, %v393
        %395 = vdwg.mxu0
        %v396 = vmax.f32 %v357, 0.0
        %v397 = vmax.f32 %v359, 0.0
        %v398 = vmax.f32 %v362, 0.0
        %v399 = vmax.f32 %v364, 0.0
        %v400 = vmax.f32 %v367, 0.0
        %v401 = vmax.f32 %v369, 0.0
        %v402 = vmax.f32 %v372, 0.0
        %v403 = vmax.f32 %v374, 0.0
        %v404 = vmax.f32 %v377, 0.0
        %v405 = vmax.f32 %v379, 0.0
        %v406 = vmax.f32 %v382, 0.0
        %v407 = vmax.f32 %v384, 0.0
        %v408 = vmax.f32 %v387, 0.0
        %v409 = vmax.f32 %v389, 0.0
        %v410 = vmax.f32 %v392, 0.0
        %v411 = vmax.f32 %v394, 0.0
        %v412 = vpack.c.bf16 %v397, %v396
        %v413 = vpack.c.bf16 %v399, %v398
        %v414 = vpack.c.bf16 %v401, %v400
        %v415 = vpack.c.bf16 %v403, %v402
        %v416 = vpack.c.bf16 %v405, %v404
        %v417 = vpack.c.bf16 %v407, %v406
        %v418 = vpack.c.bf16 %v409, %v408
        %v419 = vpack.c.bf16 %v411, %v410
        %v420 = vld [vmem:[%s3] sm:$0xf]
        %v421 = vld [vmem:[%s3 + $0x4] sm:$0xf]
        %v422 = vld [vmem:[%s3 + $0x8] sm:$0xf]
        %v423 = vld [vmem:[%s3 + $0xc] sm:$0xf]
        %v424 = vld [vmem:[%s3 + $0x10] sm:$0xf]
        %v425 = vld [vmem:[%s3 + $0x14] sm:$0xf]
        %v426 = vld [vmem:[%s3 + $0x18] sm:$0xf]
        %v427 = vld [vmem:[%s3 + $0x1c] sm:$0xf]
        %v428 = vld [vmem:[%s3 + $0x20] sm:$0xf]
        %v429 = vld [vmem:[%s3 + $0x24] sm:$0xf]
        %v430 = vld [vmem:[%s3 + $0x28] sm:$0xf]
        %v431 = vld [vmem:[%s3 + $0x2c] sm:$0xf]
        %v432 = vld [vmem:[%s3 + $0x30] sm:$0xf]
        %v433 = vld [vmem:[%s3 + $0x34] sm:$0xf]
        %v434 = vld [vmem:[%s3 + $0x38] sm:$0xf]
        %v435 = vld [vmem:[%s3 + $0x3c] sm:$0xf]
        %v436 = vld [vmem:[%s4] sm:$0xf]
        %v437 = vld [vmem:[%s4 + $0x4] sm:$0xf]
        %v438 = vld [vmem:[%s4 + $0x8] sm:$0xf]
        %v439 = vld [vmem:[%s4 + $0xc] sm:$0xf]
        %v444 = vunpack.c.l.b16 %v436
        %v445 = vunpack.c.l.b16 %v437
        %v446 = vunpack.c.l.b16 %v438
        %v447 = vunpack.c.l.b16 %v439
        %v448 = vpack.c.b16 %v445, %v444
        %v449 = vpack.c.b16 %v447, %v446
        %452 = vmatpush.bf16.msra.mxu0 0
        %453 = vmatpush.bf16.msra.mxu0 0
        %454 = vmatpush.bf16.msra.mxu0 0
        %455 = vmatpush.bf16.msra.mxu0 0
        %456 = vmatpush.bf16.msra.mxu0 0
        %457 = vmatpush.bf16.msra.mxu0 0
        %458 = vmatpush.bf16.msra.mxu0 %v449
        %459 = vmatpush.bf16.msra.mxu0 %v448
        %460 = vmatmul.bf16.gmra.mxu0 %v324
        %v461 = vpop.f32.mrf.mxu0
        %v462 = vadd.f32 0.0, %v461
        %v463 = vpop.f32.mrf.mxu0
        %v464 = vadd.f32 0.0, %v463
        %465 = vmatmul.bf16.gmra.mxu0 %v327
        %v466 = vpop.f32.mrf.mxu0
        %v467 = vadd.f32 0.0, %v466
        %v468 = vpop.f32.mrf.mxu0
        %v469 = vadd.f32 0.0, %v468
        %470 = vmatmul.bf16.gmra.mxu0 %v330
        %v471 = vpop.f32.mrf.mxu0
        %v472 = vadd.f32 0.0, %v471
        %v473 = vpop.f32.mrf.mxu0
        %v474 = vadd.f32 0.0, %v473
        %475 = vmatmul.bf16.gmra.mxu0 %v333
        %v476 = vpop.f32.mrf.mxu0
        %v477 = vadd.f32 0.0, %v476
        %v478 = vpop.f32.mrf.mxu0
        %v479 = vadd.f32 0.0, %v478
        %480 = vmatmul.bf16.gmra.mxu0 %v336
        %v481 = vpop.f32.mrf.mxu0
        %v482 = vadd.f32 0.0, %v481
        %v483 = vpop.f32.mrf.mxu0
        %v484 = vadd.f32 0.0, %v483
        %485 = vmatmul.bf16.gmra.mxu0 %v339
        %v486 = vpop.f32.mrf.mxu0
        %v487 = vadd.f32 0.0, %v486
        %v488 = vpop.f32.mrf.mxu0
        %v489 = vadd.f32 0.0, %v488
        %490 = vmatmul.bf16.gmra.mxu0 %v342
        %v491 = vpop.f32.mrf.mxu0
        %v492 = vadd.f32 0.0, %v491
        %v493 = vpop.f32.mrf.mxu0
        %v494 = vadd.f32 0.0, %v493
        %495 = vmatmul.bf16.gmra.mxu0 %v345
        %v496 = vpop.f32.mrf.mxu0
        %v497 = vadd.f32 0.0, %v496
        %v498 = vpop.f32.mrf.mxu0
        %v499 = vadd.f32 0.0, %v498
        %500 = vdwg.mxu0
        %v517 = vunpack.c.l.b16 %v420
        %v518 = vunpack.c.l.b16 %v421
        %v519 = vunpack.c.l.b16 %v422
        %v520 = vunpack.c.l.b16 %v423
        %v521 = vunpack.c.l.b16 %v424
        %v522 = vunpack.c.l.b16 %v425
        %v523 = vunpack.c.l.b16 %v426
        %v524 = vunpack.c.l.b16 %v427
        %v525 = vunpack.c.l.b16 %v428
        %v526 = vunpack.c.l.b16 %v429
        %v527 = vunpack.c.l.b16 %v430
        %v528 = vunpack.c.l.b16 %v431
        %v529 = vunpack.c.l.b16 %v432
        %v530 = vunpack.c.l.b16 %v433
        %v531 = vunpack.c.l.b16 %v434
        %v532 = vunpack.c.l.b16 %v435
        %v533 = vpack.c.b16 %v518, %v517
        %v534 = vpack.c.b16 %v520, %v519
        %v535 = vpack.c.b16 %v522, %v521
        %v536 = vpack.c.b16 %v524, %v523
        %v537 = vpack.c.b16 %v526, %v525
        %v538 = vpack.c.b16 %v528, %v527
        %v539 = vpack.c.b16 %v530, %v529
        %v540 = vpack.c.b16 %v532, %v531
        %549 = vmatpush.bf16.msra.mxu0 %v540
        %550 = vmatpush.bf16.msra.mxu0 %v539
        %551 = vmatpush.bf16.msra.mxu0 %v538
        %552 = vmatpush.bf16.msra.mxu0 %v537
        %553 = vmatpush.bf16.msra.mxu0 %v536
        %554 = vmatpush.bf16.msra.mxu0 %v535
        %555 = vmatpush.bf16.msra.mxu0 %v534
        %556 = vmatpush.bf16.msra.mxu0 %v533
        %557 = vmatmul.bf16.gmra.mxu0 %v412
        %v558 = vpop.f32.mrf.mxu0
        %v559 = vadd.f32 %v462, %v558
        %v560 = vpop.f32.mrf.mxu0
        %v561 = vadd.f32 %v464, %v560
        %562 = vmatmul.bf16.gmra.mxu0 %v413
        %v563 = vpop.f32.mrf.mxu0
        %v564 = vadd.f32 %v467, %v563
        %v565 = vpop.f32.mrf.mxu0
        %v566 = vadd.f32 %v469, %v565
        %567 = vmatmul.bf16.gmra.mxu0 %v414
        %v568 = vpop.f32.mrf.mxu0
        %v569 = vadd.f32 %v472, %v568
        %v570 = vpop.f32.mrf.mxu0
        %v571 = vadd.f32 %v474, %v570
        %572 = vmatmul.bf16.gmra.mxu0 %v415
        %v573 = vpop.f32.mrf.mxu0
        %v574 = vadd.f32 %v477, %v573
        %v575 = vpop.f32.mrf.mxu0
        %v576 = vadd.f32 %v479, %v575
        %577 = vmatmul.bf16.gmra.mxu0 %v416
        %v578 = vpop.f32.mrf.mxu0
        %v579 = vadd.f32 %v482, %v578
        %v580 = vpop.f32.mrf.mxu0
        %v581 = vadd.f32 %v484, %v580
        %582 = vmatmul.bf16.gmra.mxu0 %v417
        %v583 = vpop.f32.mrf.mxu0
        %v584 = vadd.f32 %v487, %v583
        %v585 = vpop.f32.mrf.mxu0
        %v586 = vadd.f32 %v489, %v585
        %587 = vmatmul.bf16.gmra.mxu0 %v418
        %v588 = vpop.f32.mrf.mxu0
        %v589 = vadd.f32 %v492, %v588
        %v590 = vpop.f32.mrf.mxu0
        %v591 = vadd.f32 %v494, %v590
        %592 = vmatmul.bf16.gmra.mxu0 %v419
        %v593 = vpop.f32.mrf.mxu0
        %v594 = vadd.f32 %v497, %v593
        %v595 = vpop.f32.mrf.mxu0
        %v596 = vadd.f32 %v499, %v595
        %597 = vdwg.mxu0
        %v598 = vld [vmem:[%s5] sm:$0x1]
        %v600 = vperm.slane %v598, 0
        %v602 = vadd.f32 %v559, %v600
        %v603 = vadd.f32 %v561, %v600
        %v604 = vadd.f32 %v564, %v600
        %v605 = vadd.f32 %v566, %v600
        %v606 = vadd.f32 %v569, %v600
        %v607 = vadd.f32 %v571, %v600
        %v608 = vadd.f32 %v574, %v600
        %v609 = vadd.f32 %v576, %v600
        %v610 = vadd.f32 %v579, %v600
        %v611 = vadd.f32 %v581, %v600
        %v612 = vadd.f32 %v584, %v600
        %v613 = vadd.f32 %v586, %v600
        %v614 = vadd.f32 %v589, %v600
        %v615 = vadd.f32 %v591, %v600
        %v616 = vadd.f32 %v594, %v600
        %v617 = vadd.f32 %v596, %v600
        %618 = vst [vmem:[%s257] sm:$0xff] %v602
        %619 = vst [vmem:[%s257 + $0x8] sm:$0xff] %v603
        %620 = vst [vmem:[%s257 + $0x10] sm:$0xff] %v604
        %621 = vst [vmem:[%s257 + $0x18] sm:$0xff] %v605
        %622 = vst [vmem:[%s257 + $0x20] sm:$0xff] %v606
        %623 = vst [vmem:[%s257 + $0x28] sm:$0xff] %v607
        %624 = vst [vmem:[%s257 + $0x30] sm:$0xff] %v608
        %625 = vst [vmem:[%s257 + $0x38] sm:$0xff] %v609
        %626 = vst [vmem:[%s257 + $0x40] sm:$0xff] %v610
        %627 = vst [vmem:[%s257 + $0x48] sm:$0xff] %v611
        %628 = vst [vmem:[%s257 + $0x50] sm:$0xff] %v612
        %629 = vst [vmem:[%s257 + $0x58] sm:$0xff] %v613
        %630 = vst [vmem:[%s257 + $0x60] sm:$0xff] %v614
        %631 = vst [vmem:[%s257 + $0x68] sm:$0xff] %v615
        %632 = vst [vmem:[%s257 + $0x70] sm:$0xff] %v616
        %633 = vst [vmem:[%s257 + $0x78] sm:$0xff] %v617
        %s634 = sand.u32 %s159, 1
        %s635 = scalar_lea.sflag [#allocation3], %s634
        %s636 = sand.u32 %s159, 1
        %s637 = smul.addr %s636, 128
        %s638 = scalar_lea.vmem [#allocation2], %s637
        // Predicated region
        $region45: #{tpu_custom_call.1} parent=43 // pred_check
          %p639 = pneg %p169
        $region46: #{tpu_custom_call.1} parent=43 // pred_check_branch
          %641 = sbr.rel (%p639) target = $region48
        $region47: #{tpu_custom_call.1} parent=43 // pred_region
          %s642 = smul.u32 16, %s20
          %s643 = ssub.s32 25, %s642
          %p644 = scmp.lt.s32.totalorder %s643, 16
          %s645 = scalar_select %p644, %s643, 16
          %s646 = smul.u32 8, %s645
          %s647 = ssub.s32 128, %s646
          %s648 = sshll.u32 %s647, 4
          %649 = vsyncadd %s635, %s648
          %p650 = scmp.ne.s32.totalorder 0, %s646
          %s651 = smul.addr %s642, 8
          %s652 = scalar_lea.hbm %s6, %s651
          %s653 = smul.u32 8, %s645
          %s654 = sshll.u32 %s638, 4
          %s655 = int_to_ptr.vmem [resolvable:$true] %s654
          %s656 = sshll.u32 %s652, 4
          %s657 = int_to_ptr.hbm [resolvable:$true] %s656
          %s658 = sshll.u32 %s653, 4
          %662 = dma.vmem_to_hbm [thread:$0]  (%p650), %s655, %s658, %s657, %s635, 128, 128, 8
        $region48: #{tpu_custom_call.1} parent=43 // pred_fallthru
          _
      $region44: #{tpu_custom_call.1} parent=5 // pred_fallthru
        _
      %p663 = scmp.le.s32.totalorder 2, %s15
      // Predicated region
      $region49: #{tpu_custom_call.1} parent=5 // pred_check
        %p664 = pneg %p663
      $region50: #{tpu_custom_call.1} parent=5 // pred_check_branch
        %666 = sbr.rel (%p664) target = $region52
      $region51: #{tpu_custom_call.1} parent=5 // pred_region
        %s667 = ssub.s32 %s15, 2
        // Predicated region
        $region53: #{tpu_custom_call.1} parent=51 // pred_check
          %p668 = pneg %p175
        $region54: #{tpu_custom_call.1} parent=51 // pred_check_branch
          %670 = sbr.rel (%p668) target = $region56
        $region55: #{tpu_custom_call.1} parent=51 // pred_region
          %s671 = sand.u32 %s160, 1
          %s672 = scalar_lea.sflag [#allocation3], %s671
          %s673 = sand.u32 %s160, 1
          %s674 = smul.addr %s673, 128
          %s675 = scalar_lea.vmem [#allocation2], %s674
          %677 = dma.done %s672, 2048
        $region56: #{tpu_custom_call.1} parent=51 // pred_fallthru
          _
      $region52: #{tpu_custom_call.1} parent=5 // pred_fallthru
        _
    $region6: #{tpu_custom_call.1} parent=1 // loop_footer
      %s19 = sadd.s32 1, %s15
    $region7: #{tpu_custom_call.1} parent=1 // loop_footer_branch
      %14 = sbr.rel target = $region3
    $region8: #{tpu_custom_call.1} parent=1 // loop_exit
      _
    %678 = vsyncpa [#allocation3], 1
    %s679 = scalar_lea.sflag [#allocation3], 1
    %680 = vsyncpa %s679, 1

// kernel: tpu_custom_call.1
$region0: #{tpu_custom_call.1}
  #allocation0 [shape = 'u32[]', space=smem, size = 0x4, offset = 0x4, fixed_abs, tag = 'smem constant byte address 0x4 - core index']
  #allocation1 [shape = 'u32[72,128]{1,0:T(1,128)}', space=vmem, size = 0x9000, scoped, tag = 'internal scratch']
  %s0 = inlined_call_operand.vmem [shape: f32[200,32], index: 0, kind: input, shape index: {}]
  %s1 = inlined_call_operand.vmem [shape: bf16[32,128], index: 1, kind: input, shape index: {}]
  %s2 = inlined_call_operand.vmem [shape: f32[1,128], index: 2, kind: input, shape index: {}]
  %s3 = inlined_call_operand.vmem [shape: bf16[128,128], index: 3, kind: input, shape index: {}]
  %s4 = inlined_call_operand.vmem [shape: bf16[32,128], index: 4, kind: input, shape index: {}]
  %s5 = inlined_call_operand.vmem [shape: f32[1,128], index: 5, kind: input, shape index: {}]
  %s6 = inlined_call_operand.hbm [shape: f32[200,128], index: 6, kind: output, shape index: {}]
  %s7 = sld [smem:[#allocation0]]
  $region57: #{tpu_custom_call.1} parent=0
    _
  %s9 = ssub.s32 1, %s7
  %s10 = scalar_select 0, %s9, %s7
  $region1: #{tpu_custom_call.1} parent=0
    #allocation2 [shape = 'u8[131072]{0}', space=vmem, size = 0x20000, scoped, tag = 'output window, operand 0']
    #allocation3 [shape = 's32[2]{0}', space=sflag, size = 0x8, scoped, tag = 'scoped memory for tpu_custom_call.1']
    %11 = vsyncpa [#allocation3], 0
    %s12 = scalar_lea.sflag [#allocation3], 1
    %13 = vsyncpa %s12, 0
    loop: start=0, step=1, limit=4
    $region2: #{tpu_custom_call.1} parent=1 // loop_pre_header
      _
    $region3: #{tpu_custom_call.1} parent=1 // loop_header
      %s15 = sphi 0, %s19
      %p16 = scmp.ge.s32.totalorder %s15, 4
      %s25 = sphi 0, %s27
      %s28 = sphi 0, %s25
      %s29 = sphi 0, %s28
      %s45 = sphi 0, %s29
      %s49 = sphi 0, %s49
      %s51 = sphi 0, %s49
      %s52 = sphi 0, %s51
      %s66 = sphi 0, %s52
      %s70 = sphi 0, %s70
      %s72 = sphi 0, %s70
      %s73 = sphi 0, %s72
      %s87 = sphi 0, %s73
      %s91 = sphi 0, %s91
      %s93 = sphi 0, %s91
      %s94 = sphi 0, %s93
      %s108 = sphi 0, %s94
      %s112 = sphi 0, %s112
      %s114 = sphi 0, %s112
      %s115 = sphi 0, %s114
      %s129 = sphi 0, %s115
      %s133 = sphi 0, %s133
      %s135 = sphi 0, %s133
      %s136 = sphi 0, %s135
      %s150 = sphi 0, %s136
      %s156 = sphi 0, %s158
      %s159 = sphi 0, %s156
      %s160 = sphi 0, %s159
      %s176 = sphi 0, %s160
    $region4: #{tpu_custom_call.1} parent=1 // loop_header_branch
      %18 = sbr.rel (%p16) target = $region8
    $region5: #{tpu_custom_call.1} parent=1 // loop_body
      %s20 = ssub.s32 %s15, 1
      %s21 = ssub.s32 %s15, 2
      %s22 = sadd.s32 %s15, 1
      %s23 = ssub.s32 %s15, %s22
      %p24 = scmp.eq.s32.totalorder %s23, 0
      %s26 = sadd.s32 %s25, 1
      %s27 = scalar_select %p24, %s25, %s26
      %p30 = pneg %p24
      %p31 = scmp.eq.s32.totalorder %s15, 1
      %p32 = por %p30, %p31
      %p33 = scmp.ne.s32.totalorder %s25, %s28
      %p34 = scmp.eq.s32.totalorder %s15, 0
      %p35 = por %p33, %p34
      %p36 = scmp.ne.s32.totalorder %s25, %s28
      %p37 = scmp.eq.s32.totalorder %s20, 1
      %p38 = por %p36, %p37
      %p39 = scmp.ne.s32.totalorder %s28, %s29
      %p40 = scmp.eq.s32.totalorder %s20, 0
      %p41 = por %p39, %p40
      %p42 = scmp.ne.s32.totalorder %s28, %s29
      %p43 = scmp.eq.s32.totalorder %s21, 1
      %p44 = por %p42, %p43
      %p46 = scmp.ne.s32.totalorder %s29, %s45
      %p47 = scmp.eq.s32.totalorder %s21, 0
      %p48 = por %p46, %p47
      %s50 = sadd.s32 %s49, 1
      %p53 = scmp.eq.s32.totalorder %s15, 1
      %p54 = scmp.ne.s32.totalorder %s49, %s51
      %p55 = scmp.eq.s32.totalorder %s15, 0
      %p56 = por %p54, %p55
      %p57 = scmp.ne.s32.totalorder %s49, %s51
      %p58 = scmp.eq.s32.totalorder %s20, 1
      %p59 = por %p57, %p58
      %p60 = scmp.ne.s32.totalorder %s51, %s52
      %p61 = scmp.eq.s32.totalorder %s20, 0
      %p62 = por %p60, %p61
      %p63 = scmp.ne.s32.totalorder %s51, %s52
      %p64 = scmp.eq.s32.totalorder %s21, 1
      %p65 = por %p63, %p64
      %p67 = scmp.ne.s32.totalorder %s52, %s66
      %p68 = scmp.eq.s32.totalorder %s21, 0
      %p69 = por %p67, %p68
      %s71 = sadd.s32 %s70, 1
      %p74 = scmp.eq.s32.totalorder %s15, 1
      %p75 = scmp.ne.s32.totalorder %s70, %s72
      %p76 = scmp.eq.s32.totalorder %s15, 0
      %p77 = por %p75, %p76
      %p78 = scmp.ne.s32.totalorder %s70, %s72
      %p79 = scmp.eq.s32.totalorder %s20, 1
      %p80 = por %p78, %p79
      %p81 = scmp.ne.s32.totalorder %s72, %s73
      %p82 = scmp.eq.s32.totalorder %s20, 0
      %p83 = por %p81, %p82
      %p84 = scmp.ne.s32.totalorder %s72, %s73
      %p85 = scmp.eq.s32.totalorder %s21, 1
      %p86 = por %p84, %p85
      %p88 = scmp.ne.s32.totalorder %s73, %s87
      %p89 = scmp.eq.s32.totalorder %s21, 0
      %p90 = por %p88, %p89
      %s92 = sadd.s32 %s91, 1
      %p95 = scmp.eq.s32.totalorder %s15, 1
      %p96 = scmp.ne.s32.totalorder %s91, %s93
      %p97 = scmp.eq.s32.totalorder %s15, 0
      %p98 = por %p96, %p97
      %p99 = scmp.ne.s32.totalorder %s91, %s93
      %p100 = scmp.eq.s32.totalorder %s20, 1
      %p101 = por %p99, %p100
      %p102 = scmp.ne.s32.totalorder %s93, %s94
      %p103 = scmp.eq.s32.totalorder %s20, 0
      %p104 = por %p102, %p103
      %p105 = scmp.ne.s32.totalorder %s93, %s94
      %p106 = scmp.eq.s32.totalorder %s21, 1
      %p107 = por %p105, %p106
      %p109 = scmp.ne.s32.totalorder %s94, %s108
      %p110 = scmp.eq.s32.totalorder %s21, 0
      %p111 = por %p109, %p110
      %s113 = sadd.s32 %s112, 1
      %p116 = scmp.eq.s32.totalorder %s15, 1
      %p117 = scmp.ne.s32.totalorder %s112, %s114
      %p118 = scmp.eq.s32.totalorder %s15, 0
      %p119 = por %p117, %p118
      %p120 = scmp.ne.s32.totalorder %s112, %s114
      %p121 = scmp.eq.s32.totalorder %s20, 1
      %p122 = por %p120, %p121
      %p123 = scmp.ne.s32.totalorder %s114, %s115
      %p124 = scmp.eq.s32.totalorder %s20, 0
      %p125 = por %p123, %p124
      %p126 = scmp.ne.s32.totalorder %s114, %s115
      %p127 = scmp.eq.s32.totalorder %s21, 1
      %p128 = por %p126, %p127
      %p130 = scmp.ne.s32.totalorder %s115, %s129
      %p131 = scmp.eq.s32.totalorder %s21, 0
      %p132 = por %p130, %p131
      %s134 = sadd.s32 %s133, 1
      %p137 = scmp.eq.s32.totalorder %s15, 1
      %p138 = scmp.ne.s32.totalorder %s133, %s135
      %p139 = scmp.eq.s32.totalorder %s15, 0
      %p140 = por %p138, %p139
      %p141 = scmp.ne.s32.totalorder %s133, %s135
      %p142 = scmp.eq.s32.totalorder %s20, 1
      %p143 = por %p141, %p142
      %p144 = scmp.ne.s32.totalorder %s135, %s136
      %p145 = scmp.eq.s32.totalorder %s20, 0
      %p146 = por %p144, %p145
      %p147 = scmp.ne.s32.totalorder %s135, %s136
      %p148 = scmp.eq.s32.totalorder %s21, 1
      %p149 = por %p147, %p148
      %p151 = scmp.ne.s32.totalorder %s136, %s150
      %p152 = scmp.eq.s32.totalorder %s21, 0
      %p153 = por %p151, %p152
      %s154 = ssub.s32 %s15, %s22
      %p155 = scmp.eq.s32.totalorder %s154, 0
      %s157 = sadd.s32 %s156, 1
      %s158 = scalar_select %p155, %s156, %s157
      %p161 = pneg %p155
      %p162 = scmp.eq.s32.totalorder %s15, 1
      %p163 = por %p161, %p162
      %p164 = scmp.ne.s32.totalorder %s156, %s159
      %p165 = scmp.eq.s32.totalorder %s15, 0
      %p166 = por %p164, %p165
      %p167 = scmp.ne.s32.totalorder %s156, %s159
      %p168 = scmp.eq.s32.totalorder %s20, 1
      %p169 = por %p167, %p168
      %p170 = scmp.ne.s32.totalorder %s159, %s160
      %p171 = scmp.eq.s32.totalorder %s20, 0
      %p172 = por %p170, %p171
      %p173 = scmp.ne.s32.totalorder %s159, %s160
      %p174 = scmp.eq.s32.totalorder %s21, 1
      %p175 = por %p173, %p174
      %p177 = scmp.ne.s32.totalorder %s160, %s176
      %p178 = scmp.eq.s32.totalorder %s21, 0
      %p179 = por %p177, %p178
      %p180 = scmp.le.s32.totalorder 1, %s15
      %p181 = scmp.lt.s32.totalorder %s15, 3
      %p182 = pnand %p180, %p181
      %p183 = pneg %p182
      // Predicated region
      $region9: #{tpu_custom_call.1} parent=5 // pred_check
        _
      $region10: #{tpu_custom_call.1} parent=5 // pred_check_branch
        %185 = sbr.rel (%p182) target = $region12
      $region11: #{tpu_custom_call.1} parent=5 // pred_region
        %s186 = ssub.s32 %s15, 1
        // Predicated region
        $region13: #{tpu_custom_call.1} parent=11 // pred_check
          %p187 = pneg %p62
        $region14: #{tpu_custom_call.1} parent=11 // pred_check_branch
          %189 = sbr.rel (%p187) target = $region16
        $region15: #{tpu_custom_call.1} parent=11 // pred_region
          _
        $region16: #{tpu_custom_call.1} parent=11 // pred_fallthru
          _
        // Predicated region
        $region17: #{tpu_custom_call.1} parent=11 // pred_check
          %p190 = pneg %p83
        $region18: #{tpu_custom_call.1} parent=11 // pred_check_branch
          %192 = sbr.rel (%p190) target = $region20
        $region19: #{tpu_custom_call.1} parent=11 // pred_region
          _
        $region20: #{tpu_custom_call.1} parent=11 // pred_fallthru
          _
        // Predicated region
        $region21: #{tpu_custom_call.1} parent=11 // pred_check
          %p193 = pneg %p104
        $region22: #{tpu_custom_call.1} parent=11 // pred_check_branch
          %195 = sbr.rel (%p193) target = $region24
        $region23: #{tpu_custom_call.1} parent=11 // pred_region
          _
        $region24: #{tpu_custom_call.1} parent=11 // pred_fallthru
          _
        // Predicated region
        $region25: #{tpu_custom_call.1} parent=11 // pred_check
          %p196 = pneg %p125
        $region26: #{tpu_custom_call.1} parent=11 // pred_check_branch
          %198 = sbr.rel (%p196) target = $region28
        $region27: #{tpu_custom_call.1} parent=11 // pred_region
          _
        $region28: #{tpu_custom_call.1} parent=11 // pred_fallthru
          _
        // Predicated region
        $region29: #{tpu_custom_call.1} parent=11 // pred_check
          %p199 = pneg %p146
        $region30: #{tpu_custom_call.1} parent=11 // pred_check_branch
          %201 = sbr.rel (%p199) target = $region32
        $region31: #{tpu_custom_call.1} parent=11 // pred_region
          _
        $region32: #{tpu_custom_call.1} parent=11 // pred_fallthru
          _
      $region12: #{tpu_custom_call.1} parent=5 // pred_fallthru
        _
      %p202 = scmp.lt.s32.totalorder %s15, 2
      // Predicated region
      $region33: #{tpu_custom_call.1} parent=5 // pred_check
        %p203 = pneg %p202
      $region34: #{tpu_custom_call.1} parent=5 // pred_check_branch
        %205 = sbr.rel (%p203) target = $region36
      $region35: #{tpu_custom_call.1} parent=5 // pred_region
        // Predicated region
        $region37: #{tpu_custom_call.1} parent=35 // pred_check
          %p206 = pneg %p35
        $region38: #{tpu_custom_call.1} parent=35 // pred_check_branch
          %208 = sbr.rel (%p206) target = $region40
        $region39: #{tpu_custom_call.1} parent=35 // pred_region
          %s209 = smul.u32 16, %s15
          %s210 = ssub.s32 25, %s209
          %p211 = scmp.lt.s32.totalorder %s210, 16
          %s212 = scalar_select %p211, %s210, 16
          %s213 = smul.u32 8, %s212
          %p214 = scmp.lt.s32.totalorder %s209, 24
          %s215 = scalar_select %p214, %s209, 24
          %s216 = smul.addr %s215, 8
          %s217 = scalar_lea.vmem %s0, %s216
          %s218 = smul.u32 16, %s15
          %s219 = ssub.s32 25, %s218
          %p220 = scmp.lt.s32.totalorder %s219, 16
          %s221 = scalar_select %p220, %s219, 16
          %s222 = smul.u32 8, %s221
        $region40: #{tpu_custom_call.1} parent=35 // pred_fallthru
          _
      $region36: #{tpu_custom_call.1} parent=5 // pred_fallthru
        _
      %p223 = scmp.le.s32.totalorder 1, %s15
      %p224 = scmp.lt.s32.totalorder %s15, 3
      %p225 = pnand %p223, %p224
      %p226 = pneg %p225
      // Predicated region
      $region41: #{tpu_custom_call.1} parent=5 // pred_check
        _
      $region42: #{tpu_custom_call.1} parent=5 // pred_check_branch
        %228 = sbr.rel (%p225) target = $region44
      $region43: #{tpu_custom_call.1} parent=5 // pred_region
        %s229 = ssub.s32 %s15, 1
        %s230 = smul.u32 16, %s20
        %s231 = ssub.s32 25, %s230
        %p232 = scmp.lt.s32.totalorder %s231, 16
        %s233 = scalar_select %p232, %s231, 16
        %s234 = smul.u32 8, %s233
        %p235 = scmp.lt.s32.totalorder %s230, 24
        %s236 = scalar_select %p235, %s230, 24
        %s237 = smul.addr %s236, 8
        %s238 = scalar_lea.vmem %s0, %s237
        %p239 = pneg %p41
        %p240 = pneg %p38
        %p241 = pneg %p62
        %p242 = pneg %p59
        %p243 = pneg %p83
        %p244 = pneg %p80
        %p245 = pneg %p104
        %p246 = pneg %p101
        %p247 = pneg %p125
        %p248 = pneg %p122
        %p249 = pneg %p146
        %p250 = pneg %p143
        %p251 = pneg %p172
        %p252 = pneg %p169
        %s253 = sand.u32 %s159, 1
        %s254 = scalar_lea.sflag [#allocation3], %s253
        %s255 = sand.u32 %s159, 1
        %s256 = smul.addr %s255, 128
        %s257 = scalar_lea.vmem [#allocation2], %s256
        %s258 = smul.u32 16, %s20
        %s259 = ssub.s32 25, %s258
        %p260 = scmp.lt.s32.totalorder %s259, 16
        %s261 = scalar_select %p260, %s259, 16
        %s262 = smul.u32 8, %s261
        %p263 = scmp.lt.s32.totalorder %s258, 24
        %s264 = scalar_select %p263, %s258, 24
        %s265 = smul.addr %s264, 8
        %s266 = scalar_lea.vmem %s0, %s265
        %s267 = smul.u32 16, %s20
        %s268 = ssub.s32 25, %s267
        %p269 = scmp.lt.s32.totalorder %s268, 16
        %s270 = scalar_select %p269, %s268, 16
        %s271 = smul.u32 8, %s270
        %s272 = smul.u32 16, %s20
        %s273 = ssub.s32 25, %s272
        %p274 = scmp.lt.s32.totalorder %s273, 16
        %s275 = scalar_select %p274, %s273, 16
        %s276 = smul.u32 8, %s275
        %v278 = vld [vmem:[%s266] sm:$0xff]
        %v279 = vld [vmem:[%s266 + $0x8] sm:$0xff]
        %v280 = vld [vmem:[%s266 + $0x10] sm:$0xff]
        %v281 = vld [vmem:[%s266 + $0x18] sm:$0xff]
        %v282 = vld [vmem:[%s266 + $0x20] sm:$0xff]
        %v283 = vld [vmem:[%s266 + $0x28] sm:$0xff]
        %v284 = vld [vmem:[%s266 + $0x30] sm:$0xff]
        %v285 = vld [vmem:[%s266 + $0x38] sm:$0xff]
        %v286 = vld [vmem:[%s266 + $0x40] sm:$0xff]
        %v287 = vld [vmem:[%s266 + $0x48] sm:$0xff]
        %v288 = vld [vmem:[%s266 + $0x50] sm:$0xff]
        %v289 = vld [vmem:[%s266 + $0x58] sm:$0xff]
        %v290 = vld [vmem:[%s266 + $0x60] sm:$0xff]
        %v291 = vld [vmem:[%s266 + $0x68] sm:$0xff]
        %v292 = vld [vmem:[%s266 + $0x70] sm:$0xff]
        %v293 = vld [vmem:[%s266 + $0x78] sm:$0xff]
        %v294 = vpack.c.bf16 %v279, %v278
        %v295 = vpack.c.bf16 %v281, %v280
        %v296 = vpack.c.bf16 %v283, %v282
        %v297 = vpack.c.bf16 %v285, %v284
        %v298 = vpack.c.bf16 %v287, %v286
        %v299 = vpack.c.bf16 %v289, %v288
        %v300 = vpack.c.bf16 %v291, %v290
        %v301 = vpack.c.bf16 %v293, %v292
        %v302 = vld [vmem:[%s1] sm:$0xf]
        %v303 = vld [vmem:[%s1 + $0x4] sm:$0xf]
        %v304 = vld [vmem:[%s1 + $0x8] sm:$0xf]
        %v305 = vld [vmem:[%s1 + $0xc] sm:$0xf]
        %v306 = vld [vmem:[%s2] sm:$0x1]
        %v308 = vperm.slane %v306, 0
        %v314 = vunpack.c.l.b16 %v302
        %v315 = vunpack.c.l.b16 %v303
        %v316 = vunpack.c.l.b16 %v304
        %v317 = vunpack.c.l.b16 %v305
        %v318 = vpack.c.b16 %v315, %v314
        %v319 = vpack.c.b16 %v317, %v316
        %vm322 = vcmask 261120
        %v324 = vsel %vm322, %v294, 0
        %v327 = vsel %vm322, %v295, 0
        %v330 = vsel %vm322, %v296, 0
        %v333 = vsel %vm322, %v297, 0
        %v336 = vsel %vm322, %v298, 0
        %v339 = vsel %vm322, %v299, 0
        %v342 = vsel %vm322, %v300, 0
        %v345 = vsel %vm322, %v301, 0
        %347 = vmatpush.bf16.msra.mxu0 0
        %348 = vmatpush.bf16.msra.mxu0 0
        %349 = vmatpush.bf16.msra.mxu0 0
        %350 = vmatpush.bf16.msra.mxu0 0
        %351 = vmatpush.bf16.msra.mxu0 0
        %352 = vmatpush.bf16.msra.mxu0 0
        %353 = vmatpush.bf16.msra.mxu0 %v319
        %354 = vmatpush.bf16.msra.mxu0 %v318
        %355 = vmatmul.bf16.gmra.mxu0 %v324
        %v356 = vpop.f32.mrf.mxu0
        %v357 = vadd.f32 %v308, %v356
        %v358 = vpop.f32.mrf.mxu0
        %v359 = vadd.f32 %v308, %v358
        %360 = vmatmul.bf16.gmra.mxu0 %v327
        %v361 = vpop.f32.mrf.mxu0
        %v362 = vadd.f32 %v308, %v361
        %v363 = vpop.f32.mrf.mxu0
        %v364 = vadd.f32 %v308, %v363
        %365 = vmatmul.bf16.gmra.mxu0 %v330
        %v366 = vpop.f32.mrf.mxu0
        %v367 = vadd.f32 %v308, %v366
        %v368 = vpop.f32.mrf.mxu0
        %v369 = vadd.f32 %v308, %v368
        %370 = vmatmul.bf16.gmra.mxu0 %v333
        %v371 = vpop.f32.mrf.mxu0
        %v372 = vadd.f32 %v308, %v371
        %v373 = vpop.f32.mrf.mxu0
        %v374 = vadd.f32 %v308, %v373
        %375 = vmatmul.bf16.gmra.mxu0 %v336
        %v376 = vpop.f32.mrf.mxu0
        %v377 = vadd.f32 %v308, %v376
        %v378 = vpop.f32.mrf.mxu0
        %v379 = vadd.f32 %v308, %v378
        %380 = vmatmul.bf16.gmra.mxu0 %v339
        %v381 = vpop.f32.mrf.mxu0
        %v382 = vadd.f32 %v308, %v381
        %v383 = vpop.f32.mrf.mxu0
        %v384 = vadd.f32 %v308, %v383
        %385 = vmatmul.bf16.gmra.mxu0 %v342
        %v386 = vpop.f32.mrf.mxu0
        %v387 = vadd.f32 %v308, %v386
        %v388 = vpop.f32.mrf.mxu0
        %v389 = vadd.f32 %v308, %v388
        %390 = vmatmul.bf16.gmra.mxu0 %v345
        %v391 = vpop.f32.mrf.mxu0
        %v392 = vadd.f32 %v308, %v391
        %v393 = vpop.f32.mrf.mxu0
        %v394 = vadd.f32 %v308, %v393
        %395 = vdwg.mxu0
        %v396 = vmax.f32 %v357, 0.0
        %v397 = vmax.f32 %v359, 0.0
        %v398 = vmax.f32 %v362, 0.0
        %v399 = vmax.f32 %v364, 0.0
        %v400 = vmax.f32 %v367, 0.0
        %v401 = vmax.f32 %v369, 0.0
        %v402 = vmax.f32 %v372, 0.0
        %v403 = vmax.f32 %v374, 0.0
        %v404 = vmax.f32 %v377, 0.0
        %v405 = vmax.f32 %v379, 0.0
        %v406 = vmax.f32 %v382, 0.0
        %v407 = vmax.f32 %v384, 0.0
        %v408 = vmax.f32 %v387, 0.0
        %v409 = vmax.f32 %v389, 0.0
        %v410 = vmax.f32 %v392, 0.0
        %v411 = vmax.f32 %v394, 0.0
        %v412 = vpack.c.bf16 %v397, %v396
        %v413 = vpack.c.bf16 %v399, %v398
        %v414 = vpack.c.bf16 %v401, %v400
        %v415 = vpack.c.bf16 %v403, %v402
        %v416 = vpack.c.bf16 %v405, %v404
        %v417 = vpack.c.bf16 %v407, %v406
        %v418 = vpack.c.bf16 %v409, %v408
        %v419 = vpack.c.bf16 %v411, %v410
        %v420 = vld [vmem:[%s3] sm:$0xf]
        %v421 = vld [vmem:[%s3 + $0x4] sm:$0xf]
        %v422 = vld [vmem:[%s3 + $0x8] sm:$0xf]
        %v423 = vld [vmem:[%s3 + $0xc] sm:$0xf]
        %v424 = vld [vmem:[%s3 + $0x10] sm:$0xf]
        %v425 = vld [vmem:[%s3 + $0x14] sm:$0xf]
        %v426 = vld [vmem:[%s3 + $0x18] sm:$0xf]
        %v427 = vld [vmem:[%s3 + $0x1c] sm:$0xf]
        %v428 = vld [vmem:[%s3 + $0x20] sm:$0xf]
        %v429 = vld [vmem:[%s3 + $0x24] sm:$0xf]
        %v430 = vld [vmem:[%s3 + $0x28] sm:$0xf]
        %v431 = vld [vmem:[%s3 + $0x2c] sm:$0xf]
        %v432 = vld [vmem:[%s3 + $0x30] sm:$0xf]
        %v433 = vld [vmem:[%s3 + $0x34] sm:$0xf]
        %v434 = vld [vmem:[%s3 + $0x38] sm:$0xf]
        %v435 = vld [vmem:[%s3 + $0x3c] sm:$0xf]
        %v436 = vld [vmem:[%s4] sm:$0xf]
        %v437 = vld [vmem:[%s4 + $0x4] sm:$0xf]
        %v438 = vld [vmem:[%s4 + $0x8] sm:$0xf]
        %v439 = vld [vmem:[%s4 + $0xc] sm:$0xf]
        %v444 = vunpack.c.l.b16 %v436
        %v445 = vunpack.c.l.b16 %v437
        %v446 = vunpack.c.l.b16 %v438
        %v447 = vunpack.c.l.b16 %v439
        %v448 = vpack.c.b16 %v445, %v444
        %v449 = vpack.c.b16 %v447, %v446
        %452 = vmatpush.bf16.msra.mxu0 0
        %453 = vmatpush.bf16.msra.mxu0 0
        %454 = vmatpush.bf16.msra.mxu0 0
        %455 = vmatpush.bf16.msra.mxu0 0
        %456 = vmatpush.bf16.msra.mxu0 0
        %457 = vmatpush.bf16.msra.mxu0 0
        %458 = vmatpush.bf16.msra.mxu0 %v449
        %459 = vmatpush.bf16.msra.mxu0 %v448
        %460 = vmatmul.bf16.gmra.mxu0 %v324
        %v461 = vpop.f32.mrf.mxu0
        %v462 = vadd.f32 0.0, %v461
        %v463 = vpop.f32.mrf.mxu0
        %v464 = vadd.f32 0.0, %v463
        %465 = vmatmul.bf16.gmra.mxu0 %v327
        %v466 = vpop.f32.mrf.mxu0
        %v467 = vadd.f32 0.0, %v466
        %v468 = vpop.f32.mrf.mxu0
        %v469 = vadd.f32 0.0, %v468
        %470 = vmatmul.bf16.gmra.mxu0 %v330
        %v471 = vpop.f32.mrf.mxu0
        %v472 = vadd.f32 0.0, %v471
        %v473 = vpop.f32.mrf.mxu0
        %v474 = vadd.f32 0.0, %v473
        %475 = vmatmul.bf16.gmra.mxu0 %v333
        %v476 = vpop.f32.mrf.mxu0
        %v477 = vadd.f32 0.0, %v476
        %v478 = vpop.f32.mrf.mxu0
        %v479 = vadd.f32 0.0, %v478
        %480 = vmatmul.bf16.gmra.mxu0 %v336
        %v481 = vpop.f32.mrf.mxu0
        %v482 = vadd.f32 0.0, %v481
        %v483 = vpop.f32.mrf.mxu0
        %v484 = vadd.f32 0.0, %v483
        %485 = vmatmul.bf16.gmra.mxu0 %v339
        %v486 = vpop.f32.mrf.mxu0
        %v487 = vadd.f32 0.0, %v486
        %v488 = vpop.f32.mrf.mxu0
        %v489 = vadd.f32 0.0, %v488
        %490 = vmatmul.bf16.gmra.mxu0 %v342
        %v491 = vpop.f32.mrf.mxu0
        %v492 = vadd.f32 0.0, %v491
        %v493 = vpop.f32.mrf.mxu0
        %v494 = vadd.f32 0.0, %v493
        %495 = vmatmul.bf16.gmra.mxu0 %v345
        %v496 = vpop.f32.mrf.mxu0
        %v497 = vadd.f32 0.0, %v496
        %v498 = vpop.f32.mrf.mxu0
        %v499 = vadd.f32 0.0, %v498
        %500 = vdwg.mxu0
        %v517 = vunpack.c.l.b16 %v420
        %v518 = vunpack.c.l.b16 %v421
        %v519 = vunpack.c.l.b16 %v422
        %v520 = vunpack.c.l.b16 %v423
        %v521 = vunpack.c.l.b16 %v424
        %v522 = vunpack.c.l.b16 %v425
        %v523 = vunpack.c.l.b16 %v426
        %v524 = vunpack.c.l.b16 %v427
        %v525 = vunpack.c.l.b16 %v428
        %v526 = vunpack.c.l.b16 %v429
        %v527 = vunpack.c.l.b16 %v430
        %v528 = vunpack.c.l.b16 %v431
        %v529 = vunpack.c.l.b16 %v432
        %v530 = vunpack.c.l.b16 %v433
        %v531 = vunpack.c.l.b16 %v434
        %v532 = vunpack.c.l.b16 %v435
        %v533 = vpack.c.b16 %v518, %v517
        %v534 = vpack.c.b16 %v520, %v519
        %v535 = vpack.c.b16 %v522, %v521
        %v536 = vpack.c.b16 %v524, %v523
        %v537 = vpack.c.b16 %v526, %v525
        %v538 = vpack.c.b16 %v528, %v527
        %v539 = vpack.c.b16 %v530, %v529
        %v540 = vpack.c.b16 %v532, %v531
        %549 = vmatpush.bf16.msra.mxu0 %v540
        %550 = vmatpush.bf16.msra.mxu0 %v539
        %551 = vmatpush.bf16.msra.mxu0 %v538
        %552 = vmatpush.bf16.msra.mxu0 %v537
        %553 = vmatpush.bf16.msra.mxu0 %v536
        %554 = vmatpush.bf16.msra.mxu0 %v535
        %555 = vmatpush.bf16.msra.mxu0 %v534
        %556 = vmatpush.bf16.msra.mxu0 %v533
        %557 = vmatmul.bf16.gmra.mxu0 %v412
        %v558 = vpop.f32.mrf.mxu0
        %v559 = vadd.f32 %v462, %v558
        %v560 = vpop.f32.mrf.mxu0
        %v561 = vadd.f32 %v464, %v560
        %562 = vmatmul.bf16.gmra.mxu0 %v413
        %v563 = vpop.f32.mrf.mxu0
        %v564 = vadd.f32 %v467, %v563
        %v565 = vpop.f32.mrf.mxu0
        %v566 = vadd.f32 %v469, %v565
        %567 = vmatmul.bf16.gmra.mxu0 %v414
        %v568 = vpop.f32.mrf.mxu0
        %v569 = vadd.f32 %v472, %v568
        %v570 = vpop.f32.mrf.mxu0
        %v571 = vadd.f32 %v474, %v570
        %572 = vmatmul.bf16.gmra.mxu0 %v415
        %v573 = vpop.f32.mrf.mxu0
        %v574 = vadd.f32 %v477, %v573
        %v575 = vpop.f32.mrf.mxu0
        %v576 = vadd.f32 %v479, %v575
        %577 = vmatmul.bf16.gmra.mxu0 %v416
        %v578 = vpop.f32.mrf.mxu0
        %v579 = vadd.f32 %v482, %v578
        %v580 = vpop.f32.mrf.mxu0
        %v581 = vadd.f32 %v484, %v580
        %582 = vmatmul.bf16.gmra.mxu0 %v417
        %v583 = vpop.f32.mrf.mxu0
        %v584 = vadd.f32 %v487, %v583
        %v585 = vpop.f32.mrf.mxu0
        %v586 = vadd.f32 %v489, %v585
        %587 = vmatmul.bf16.gmra.mxu0 %v418
        %v588 = vpop.f32.mrf.mxu0
        %v589 = vadd.f32 %v492, %v588
        %v590 = vpop.f32.mrf.mxu0
        %v591 = vadd.f32 %v494, %v590
        %592 = vmatmul.bf16.gmra.mxu0 %v419
        %v593 = vpop.f32.mrf.mxu0
        %v594 = vadd.f32 %v497, %v593
        %v595 = vpop.f32.mrf.mxu0
        %v596 = vadd.f32 %v499, %v595
        %597 = vdwg.mxu0
        %v598 = vld [vmem:[%s5] sm:$0x1]
        %v600 = vperm.slane %v598, 0
        %v602 = vadd.f32 %v559, %v600
        %v603 = vadd.f32 %v561, %v600
        %v604 = vadd.f32 %v564, %v600
        %v605 = vadd.f32 %v566, %v600
        %v606 = vadd.f32 %v569, %v600
        %v607 = vadd.f32 %v571, %v600
        %v608 = vadd.f32 %v574, %v600
        %v609 = vadd.f32 %v576, %v600
        %v610 = vadd.f32 %v579, %v600
        %v611 = vadd.f32 %v581, %v600
        %v612 = vadd.f32 %v584, %v600
        %v613 = vadd.f32 %v586, %v600
        %v614 = vadd.f32 %v589, %v600
        %v615 = vadd.f32 %v591, %v600
        %v616 = vadd.f32 %v594, %v600
        %v617 = vadd.f32 %v596, %v600
        %618 = vst [vmem:[%s257] sm:$0xff] %v602
        %619 = vst [vmem:[%s257 + $0x8] sm:$0xff] %v603
        %620 = vst [vmem:[%s257 + $0x10] sm:$0xff] %v604
        %621 = vst [vmem:[%s257 + $0x18] sm:$0xff] %v605
        %622 = vst [vmem:[%s257 + $0x20] sm:$0xff] %v606
        %623 = vst [vmem:[%s257 + $0x28] sm:$0xff] %v607
        %624 = vst [vmem:[%s257 + $0x30] sm:$0xff] %v608
        %625 = vst [vmem:[%s257 + $0x38] sm:$0xff] %v609
        %626 = vst [vmem:[%s257 + $0x40] sm:$0xff] %v610
        %627 = vst [vmem:[%s257 + $0x48] sm:$0xff] %v611
        %628 = vst [vmem:[%s257 + $0x50] sm:$0xff] %v612
        %629 = vst [vmem:[%s257 + $0x58] sm:$0xff] %v613
        %630 = vst [vmem:[%s257 + $0x60] sm:$0xff] %v614
        %631 = vst [vmem:[%s257 + $0x68] sm:$0xff] %v615
        %632 = vst [vmem:[%s257 + $0x70] sm:$0xff] %v616
        %633 = vst [vmem:[%s257 + $0x78] sm:$0xff] %v617
        %s634 = sand.u32 %s159, 1
        %s635 = scalar_lea.sflag [#allocation3], %s634
        %s636 = sand.u32 %s159, 1
        %s637 = smul.addr %s636, 128
        %s638 = scalar_lea.vmem [#allocation2], %s637
        // Predicated region
        $region45: #{tpu_custom_call.1} parent=43 // pred_check
          %p639 = pneg %p169
        $region46: #{tpu_custom_call.1} parent=43 // pred_check_branch
          %641 = sbr.rel (%p639) target = $region48
        $region47: #{tpu_custom_call.1} parent=43 // pred_region
          %s642 = smul.u32 16, %s20
          %s643 = ssub.s32 25, %s642
          %p644 = scmp.lt.s32.totalorder %s643, 16
          %s645 = scalar_select %p644, %s643, 16
          %s646 = smul.u32 8, %s645
          %s647 = ssub.s32 128, %s646
          %s648 = sshll.u32 %s647, 4
          %649 = vsyncadd %s635, %s648
          %p650 = scmp.ne.s32.totalorder 0, %s646
          %s651 = smul.addr %s642, 8
          %s652 = scalar_lea.hbm %s6, %s651
          %s653 = smul.u32 8, %s645
          %s654 = sshll.u32 %s638, 4
          %s655 = int_to_ptr.vmem [resolvable:$true] %s654
          %s656 = sshll.u32 %s652, 4
          %s657 = int_to_ptr.hbm [resolvable:$true] %s656
          %s658 = sshll.u32 %s653, 4
          %662 = dma.vmem_to_hbm [thread:$0]  (%p650), %s655, %s658, %s657, %s635, 128, 128, 8
        $region48: #{tpu_custom_call.1} parent=43 // pred_fallthru
          _
      $region44: #{tpu_custom_call.1} parent=5 // pred_fallthru
        _
      %p663 = scmp.le.s32.totalorder 2, %s15
      // Predicated region
      $region49: #{tpu_custom_call.1} parent=5 // pred_check
        %p664 = pneg %p663
      $region50: #{tpu_custom_call.1} parent=5 // pred_check_branch
        %666 = sbr.rel (%p664) target = $region52
      $region51: #{tpu_custom_call.1} parent=5 // pred_region
        %s667 = ssub.s32 %s15, 2
        // Predicated region
        $region53: #{tpu_custom_call.1} parent=51 // pred_check
          %p668 = pneg %p175
        $region54: #{tpu_custom_call.1} parent=51 // pred_check_branch
          %670 = sbr.rel (%p668) target = $region56
        $region55: #{tpu_custom_call.1} parent=51 // pred_region
          %s671 = sand.u32 %s160, 1
          %s672 = scalar_lea.sflag [#allocation3], %s671
          %s673 = sand.u32 %s160, 1
          %s674 = smul.addr %s673, 128
          %s675 = scalar_lea.vmem [#allocation2], %s674
          %677 = dma.done %s672, 2048
        $region56: #{tpu_custom_call.1} parent=51 // pred_fallthru
          _
      $region52: #{tpu_custom_call.1} parent=5 // pred_fallthru
        _
    $region6: #{tpu_custom_call.1} parent=1 // loop_footer
      %s19 = sadd.s32 1, %s15
    $region7: #{tpu_custom_call.1} parent=1 // loop_footer_branch
      %14 = sbr.rel target = $region3
    $region8: #{tpu_custom_call.1} parent=1 // loop_exit
      _
    %678 = vsyncpa [#allocation3], 1
    %s679 = scalar_lea.sflag [#allocation3], 1
    %680 = vsyncpa %s679, 1

</llo_original>
